<compile_context>
chip_gen: v6e
topology: v6e:2x2x1
jax: 0.10.0
libtpu: 0.0.40
codegen_flags: <defaults>
</compile_context>

<pallas_src>
import math

import jax
import jax.numpy as jnp
from jax.experimental import pallas as pl
from jax.experimental.pallas import tpu as pltpu


K_IN = 784        # flattened 28x28 images
K_PAD = 896       # 7 * 128 — lane-aligned K for the first matmul
OUT_PAD = 128     # lane-dense output block width (col 0 holds the result)


def _round_up(n, m):
    return ((n + m - 1) // m) * m


# -----------------------------------------------------------------------------
# Kernel (one batch tile per grid step; weights resident in VMEM)
# -----------------------------------------------------------------------------
def discriminator_kernel(
    x_ref,                       # (TB, 896)  bf16
    w1_ref, b1_ref,              # (896, 512) bf16 ; (1, 512) f32
    w2_ref, b2_ref,              # (512, 256) bf16 ; (1, 256) f32
    w3_ref, b3_ref,              # (256, 128) bf16 ; (1, 128) f32
    w4_ref, b4_ref,              # (1, 128)   f32  ; (1, 1)   f32
    o_ref,                       # (TB, 128)  f32  (lane-dense padded output)
):
    def leaky_relu(h):
        return jnp.where(h > 0, h, 0.2 * h)

    x = x_ref[...]  # bf16

    # bf16 MXU operands, f32 accumulation; elementwise work in f32.
    h = jnp.dot(x, w1_ref[...], preferred_element_type=jnp.float32) + b1_ref[...]
    h = leaky_relu(h)

    h = jnp.dot(h.astype(jnp.bfloat16), w2_ref[...],
                preferred_element_type=jnp.float32) + b2_ref[...]
    h = leaky_relu(h)

    h = jnp.dot(h.astype(jnp.bfloat16), w3_ref[...],
                preferred_element_type=jnp.float32) + b3_ref[...]
    h = leaky_relu(h)                                   # (TB, 128) f32

    # Final 128 -> 1 layer: VPU multiply + lane reduction (skip the N=1 matmul).
    logits = jnp.sum(h * w4_ref[...], axis=-1, keepdims=True) + b4_ref[...]

    p = jax.nn.sigmoid(logits)                          # (TB, 1) f32

    # Lane-dense store: fill the padded 128-wide output block (col 0 is real).
    o_ref[...] = jnp.broadcast_to(p, o_ref.shape).astype(o_ref.dtype)


# -----------------------------------------------------------------------------
# Wrapper
# -----------------------------------------------------------------------------
def discriminator_forward(x, params, *, tb=512):
    """x: (B, 784) float32. params: dict of W1..W4 (in,out) and b1..b4 (1,out)."""
    B, K = x.shape
    assert K == K_IN, f"expected {K_IN} input features, got {K}"

    # Batch tile: 512 for big batches (amortizes per-step overhead, fills the
    # MXU), shrink to a sublane-aligned tile for tiny batches.
    if B < tb:
        tb = max(8, _round_up(B, 8))
    b_pad = _round_up(B, tb)

    # Pad batch + feature dims and cast activations to bf16 (halves HBM traffic).
    x_p = jnp.zeros((b_pad, K_PAD), dtype=jnp.bfloat16)
    x_p = x_p.at[:B, :K].set(x.astype(jnp.bfloat16))

    # Weight prep: bf16 MXU operands; layer-1 K zero-padded to 896; the final
    # 128->1 weight becomes an f32 row vector for the VPU reduction path.
    w1 = jnp.pad(params["W1"], ((0, K_PAD - K_IN), (0, 0))).astype(jnp.bfloat16)
    w2 = params["W2"].astype(jnp.bfloat16)
    w3 = params["W3"].astype(jnp.bfloat16)
    w4 = params["W4"].reshape(1, 128).astype(jnp.float32)
    b1 = params["b1"].astype(jnp.float32)
    b2 = params["b2"].astype(jnp.float32)
    b3 = params["b3"].astype(jnp.float32)
    b4 = params["b4"].reshape(1, 1).astype(jnp.float32)

    operands = (x_p, w1, b1, w2, b2, w3, b3, w4, b4)

    def resident(a):
        # Constant block index across the grid -> fetched once, stays in VMEM.
        return pl.BlockSpec(a.shape, lambda i: (0,) * a.ndim)

    out = pl.pallas_call(
        discriminator_kernel,
        out_shape=jax.ShapeDtypeStruct((b_pad, OUT_PAD), jnp.float32),
        grid=(b_pad // tb,),
        in_specs=[pl.BlockSpec((tb, K_PAD), lambda i: (i, 0))]
        + [resident(a) for a in operands[1:]],
        out_specs=pl.BlockSpec((tb, OUT_PAD), lambda i: (i, 0)),
        compiler_params=pltpu.CompilerParams(
            dimension_semantics=("parallel",),
        ),
    )(*operands)

    return out[:B, :1]


# -----------------------------------------------------------------------------
# Deterministic parameter init (matches PyTorch _init_weights:
# xavier_uniform_ on weights, zeros on biases). Stored as (in, out).
# -----------------------------------------------------------------------------
def init_params(key):
    dims = [784, 512, 256, 128, 1]
    params = {}
    for i, (fan_in, fan_out) in enumerate(zip(dims[:-1], dims[1:]), start=1):
        key, sub = jax.random.split(key)
        bound = math.sqrt(6.0 / (fan_in + fan_out))
        params[f"W{i}"] = jax.random.uniform(
            sub, (fan_in, fan_out), minval=-bound, maxval=bound, dtype=jnp.float32
        )
        params[f"b{i}"] = jnp.zeros((1, fan_out), dtype=jnp.float32)
    return params


# Pure-JAX f32 reference for correctness.
def discriminator_ref(x, params):
    h = x
    for i in range(1, 4):
        h = h @ params[f"W{i}"] + params[f"b{i}"]
        h = jnp.where(h > 0, h, 0.2 * h)
    logits = h @ params["W4"] + params["b4"]
    return jax.nn.sigmoid(logits)


if __name__ == "__main__":
    key = jax.random.PRNGKey(0)
    key, pkey, xkey = jax.random.split(key, 3)

    params = init_params(pkey)
    # Small batch; 784 features fixed by the module (flattened 28x28 images).
    x = jax.random.normal(xkey, (8, 784), dtype=jnp.float32)

    out = discriminator_forward(x, params)
    out = jax.block_until_ready(out)

    ref = discriminator_ref(x, params)
    assert out.shape == (8, 1)
    # bf16 MXU operands -> loosened tolerance vs the f32 reference.
    assert jnp.allclose(out, ref, atol=3e-2, rtol=3e-2), "mismatch vs reference"

    print("KERNEL_OK")
</pallas_src>

<mosaic_0001>
module attributes {stable_mosaic.version = 11 : i64} {
  func.func @discriminator_kernel(%arg0: i32, %arg1: memref<8x896xbf16, #tpu.memory_space<vmem>>, %arg2: memref<896x512xbf16, #tpu.memory_space<vmem>>, %arg3: memref<1x512xf32, #tpu.memory_space<vmem>>, %arg4: memref<512x256xbf16, #tpu.memory_space<vmem>>, %arg5: memref<1x256xf32, #tpu.memory_space<vmem>>, %arg6: memref<256x128xbf16, #tpu.memory_space<vmem>>, %arg7: memref<1x128xf32, #tpu.memory_space<vmem>>, %arg8: memref<1x128xf32, #tpu.memory_space<vmem>>, %arg9: memref<1x1xf32, #tpu.memory_space<vmem>>, %arg10: memref<8x128xf32, #tpu.memory_space<vmem>>) attributes {dimension_semantics = [#tpu.dimension_semantics<parallel>], iteration_bounds = array<i64: 1>, scalar_prefetch = 0 : i64, scratch_operands = 0 : i64, tpu.core_type = #tpu.core_type<tc>, window_params = [{transform_indices = @transform_0, window_bounds = array<i64: 8, 896>}, {pipeline_mode = #tpu.pipeline_mode<synchronous>, transform_indices = @transform_1, window_bounds = array<i64: 896, 512>}, {pipeline_mode = #tpu.pipeline_mode<synchronous>, transform_indices = @transform_2, window_bounds = array<i64: 1, 512>}, {pipeline_mode = #tpu.pipeline_mode<synchronous>, transform_indices = @transform_3, window_bounds = array<i64: 512, 256>}, {pipeline_mode = #tpu.pipeline_mode<synchronous>, transform_indices = @transform_4, window_bounds = array<i64: 1, 256>}, {pipeline_mode = #tpu.pipeline_mode<synchronous>, transform_indices = @transform_5, window_bounds = array<i64: 256, 128>}, {pipeline_mode = #tpu.pipeline_mode<synchronous>, transform_indices = @transform_6, window_bounds = array<i64: 1, 128>}, {pipeline_mode = #tpu.pipeline_mode<synchronous>, transform_indices = @transform_7, window_bounds = array<i64: 1, 128>}, {pipeline_mode = #tpu.pipeline_mode<synchronous>, transform_indices = @transform_8, window_bounds = array<i64: 1, 1>}, {transform_indices = @transform_9, window_bounds = array<i64: 8, 128>}]} {
    %c0 = arith.constant 0 : index
    %c0_0 = arith.constant 0 : index
    %0 = vector.load %arg1[%c0, %c0_0] : memref<8x896xbf16, #tpu.memory_space<vmem>>, vector<8x896xbf16>
    %c0_1 = arith.constant 0 : index
    %c0_2 = arith.constant 0 : index
    %1 = vector.load %arg2[%c0_1, %c0_2] : memref<896x512xbf16, #tpu.memory_space<vmem>>, vector<896x512xbf16>
    %cst = arith.constant dense<0.000000e+00> : vector<8x512xf32>
    %2 = tpu.matmul %0, %1, %cst {dimension_numbers = #tpu.dot_dimension_numbers<[1], [0], [0], [1], [0, 0, 1, 1], [], []>} : vector<8x896xbf16>, vector<896x512xbf16>, vector<8x512xf32> -> vector<8x512xf32>
    %c0_3 = arith.constant 0 : index
    %c0_4 = arith.constant 0 : index
    %3 = vector.load %arg3[%c0_3, %c0_4] : memref<1x512xf32, #tpu.memory_space<vmem>>, vector<1x512xf32>
    %4 = vector.broadcast %3 : vector<1x512xf32> to vector<8x512xf32>
    %5 = arith.addf %2, %4 : vector<8x512xf32>
    %cst_5 = arith.constant 0.000000e+00 : f32
    %6 = vector.broadcast %cst_5 : f32 to vector<8x512xf32>
    %7 = arith.cmpf ogt, %5, %6 : vector<8x512xf32>
    %cst_6 = arith.constant 2.000000e-01 : f32
    %8 = vector.broadcast %cst_6 : f32 to vector<8x512xf32>
    %9 = arith.mulf %8, %5 : vector<8x512xf32>
    %10 = arith.select %7, %5, %9 : vector<8x512xi1>, vector<8x512xf32>
    %11 = arith.truncf %10 : vector<8x512xf32> to vector<8x512xbf16>
    %c0_7 = arith.constant 0 : index
    %c0_8 = arith.constant 0 : index
    %12 = vector.load %arg4[%c0_7, %c0_8] : memref<512x256xbf16, #tpu.memory_space<vmem>>, vector<512x256xbf16>
    %cst_9 = arith.constant dense<0.000000e+00> : vector<8x256xf32>
    %13 = tpu.matmul %11, %12, %cst_9 {dimension_numbers = #tpu.dot_dimension_numbers<[1], [0], [0], [1], [0, 0, 1, 1], [], []>} : vector<8x512xbf16>, vector<512x256xbf16>, vector<8x256xf32> -> vector<8x256xf32>
    %c0_10 = arith.constant 0 : index
    %c0_11 = arith.constant 0 : index
    %14 = vector.load %arg5[%c0_10, %c0_11] : memref<1x256xf32, #tpu.memory_space<vmem>>, vector<1x256xf32>
    %15 = vector.broadcast %14 : vector<1x256xf32> to vector<8x256xf32>
    %16 = arith.addf %13, %15 : vector<8x256xf32>
    %cst_12 = arith.constant 0.000000e+00 : f32
    %17 = vector.broadcast %cst_12 : f32 to vector<8x256xf32>
    %18 = arith.cmpf ogt, %16, %17 : vector<8x256xf32>
    %cst_13 = arith.constant 2.000000e-01 : f32
    %19 = vector.broadcast %cst_13 : f32 to vector<8x256xf32>
    %20 = arith.mulf %19, %16 : vector<8x256xf32>
    %21 = arith.select %18, %16, %20 : vector<8x256xi1>, vector<8x256xf32>
    %22 = arith.truncf %21 : vector<8x256xf32> to vector<8x256xbf16>
    %c0_14 = arith.constant 0 : index
    %c0_15 = arith.constant 0 : index
    %23 = vector.load %arg6[%c0_14, %c0_15] : memref<256x128xbf16, #tpu.memory_space<vmem>>, vector<256x128xbf16>
    %cst_16 = arith.constant dense<0.000000e+00> : vector<8x128xf32>
    %24 = tpu.matmul %22, %23, %cst_16 {dimension_numbers = #tpu.dot_dimension_numbers<[1], [0], [0], [1], [0, 0, 1, 1], [], []>} : vector<8x256xbf16>, vector<256x128xbf16>, vector<8x128xf32> -> vector<8x128xf32>
    %c0_17 = arith.constant 0 : index
    %c0_18 = arith.constant 0 : index
    %25 = vector.load %arg7[%c0_17, %c0_18] : memref<1x128xf32, #tpu.memory_space<vmem>>, vector<1x128xf32>
    %26 = vector.broadcast %25 : vector<1x128xf32> to vector<8x128xf32>
    %27 = arith.addf %24, %26 : vector<8x128xf32>
    %cst_19 = arith.constant 0.000000e+00 : f32
    %28 = vector.broadcast %cst_19 : f32 to vector<8x128xf32>
    %29 = arith.cmpf ogt, %27, %28 : vector<8x128xf32>
    %cst_20 = arith.constant 2.000000e-01 : f32
    %30 = vector.broadcast %cst_20 : f32 to vector<8x128xf32>
    %31 = arith.mulf %30, %27 : vector<8x128xf32>
    %32 = arith.select %29, %27, %31 : vector<8x128xi1>, vector<8x128xf32>
    %c0_21 = arith.constant 0 : index
    %c0_22 = arith.constant 0 : index
    %33 = vector.load %arg8[%c0_21, %c0_22] : memref<1x128xf32, #tpu.memory_space<vmem>>, vector<1x128xf32>
    %34 = vector.broadcast %33 : vector<1x128xf32> to vector<8x128xf32>
    %35 = arith.mulf %32, %34 : vector<8x128xf32>
    %cst_23 = arith.constant dense<0.000000e+00> : vector<8xf32>
    %36 = vector.multi_reduction <add>, %35, %cst_23 [1] : vector<8x128xf32> to vector<8xf32>
    %37 = vector.shape_cast %36 : vector<8xf32> to vector<8x1xf32>
    %c0_24 = arith.constant 0 : index
    %c0_25 = arith.constant 0 : index
    %38 = vector.load %arg9[%c0_24, %c0_25] : memref<1x1xf32, #tpu.memory_space<vmem>>, vector<1x1xf32>
    %39 = vector.broadcast %38 : vector<1x1xf32> to vector<8x1xf32>
    %40 = arith.addf %37, %39 : vector<8x1xf32>
    %41 = arith.negf %40 : vector<8x1xf32>
    %42 = math.exp %41 : vector<8x1xf32>
    %cst_26 = arith.constant 1.000000e+00 : f32
    %43 = vector.broadcast %cst_26 : f32 to vector<8x1xf32>
    %44 = arith.addf %43, %42 : vector<8x1xf32>
    %45 = arith.divf %43, %44 : vector<8x1xf32>
    %46 = vector.shape_cast %45 : vector<8x1xf32> to vector<8x1xf32>
    %47 = vector.broadcast %46 : vector<8x1xf32> to vector<8x128xf32>
    %c0_27 = arith.constant 0 : index
    %c0_28 = arith.constant 0 : index
    %48 = vector.load %arg10[%c0_27, %c0_28] : memref<8x128xf32, #tpu.memory_space<vmem>>, vector<8x128xf32>
    tpu.vector_store %arg10[%c0_27, %c0_28], %47 {strides = array<i32>} : memref<8x128xf32, #tpu.memory_space<vmem>>, vector<8x128xf32>,
    return
  }
  func.func @transform_0(%arg0: i32) -> (i32, i32) {
    %c0_i32 = arith.constant 0 : i32
    %c0_i32_0 = arith.constant 0 : i32
    return %arg0, %c0_i32 : i32, i32
  }
  func.func @transform_1(%arg0: i32) -> (i32, i32) {
    %c0_i32 = arith.constant 0 : i32
    %c0_i32_0 = arith.constant 0 : i32
    %c0_i32_1 = arith.constant 0 : i32
    return %c0_i32, %c0_i32_0 : i32, i32
  }
  func.func @transform_2(%arg0: i32) -> (i32, i32) {
    %c0_i32 = arith.constant 0 : i32
    %c0_i32_0 = arith.constant 0 : i32
    %c0_i32_1 = arith.constant 0 : i32
    return %c0_i32, %c0_i32_0 : i32, i32
  }
  func.func @transform_3(%arg0: i32) -> (i32, i32) {
    %c0_i32 = arith.constant 0 : i32
    %c0_i32_0 = arith.constant 0 : i32
    %c0_i32_1 = arith.constant 0 : i32
    return %c0_i32, %c0_i32_0 : i32, i32
  }
  func.func @transform_4(%arg0: i32) -> (i32, i32) {
    %c0_i32 = arith.constant 0 : i32
    %c0_i32_0 = arith.constant 0 : i32
    %c0_i32_1 = arith.constant 0 : i32
    return %c0_i32, %c0_i32_0 : i32, i32
  }
  func.func @transform_5(%arg0: i32) -> (i32, i32) {
    %c0_i32 = arith.constant 0 : i32
    %c0_i32_0 = arith.constant 0 : i32
    %c0_i32_1 = arith.constant 0 : i32
    return %c0_i32, %c0_i32_0 : i32, i32
  }
  func.func @transform_6(%arg0: i32) -> (i32, i32) {
    %c0_i32 = arith.constant 0 : i32
    %c0_i32_0 = arith.constant 0 : i32
    %c0_i32_1 = arith.constant 0 : i32
    return %c0_i32, %c0_i32_0 : i32, i32
  }
  func.func @transform_7(%arg0: i32) -> (i32, i32) {
    %c0_i32 = arith.constant 0 : i32
    %c0_i32_0 = arith.constant 0 : i32
    %c0_i32_1 = arith.constant 0 : i32
    return %c0_i32, %c0_i32_0 : i32, i32
  }
  func.func @transform_8(%arg0: i32) -> (i32, i32) {
    %c0_i32 = arith.constant 0 : i32
    %c0_i32_0 = arith.constant 0 : i32
    %c0_i32_1 = arith.constant 0 : i32
    return %c0_i32, %c0_i32_0 : i32, i32
  }
  func.func @transform_9(%arg0: i32) -> (i32, i32) {
    %c0_i32 = arith.constant 0 : i32
    %c0_i32_0 = arith.constant 0 : i32
    return %arg0, %c0_i32 : i32, i32
  }
}

</mosaic_0001>

<llo_original>
// kernel: tpu_custom_call.1
$region0: #{tpu_custom_call.1}
  #allocation0 [shape = 'u32[]', space=smem, size = 0x4, offset = 0x4, fixed_abs, tag = 'smem constant byte address 0x4 - core index']
  #allocation1 [shape = 'u32[144,128]{1,0:T(1,128)}', space=vmem, size = 0x12000, scoped, tag = 'internal scratch']
  #allocation2 [shape = 'f32[1,1]{1,0:T(1,128)S(1)}', space=vmem, size = 0x200, scoped, tag = 'scoped memory for tpu_custom_call.1']
  %s0 = inlined_call_operand.hbm [shape: bf16[8,896], index: 0, kind: input, shape index: {}]
  %s1 = inlined_call_operand.hbm [shape: bf16[896,512], index: 1, kind: input, shape index: {}]
  %s2 = inlined_call_operand.vmem [shape: f32[1,512], index: 2, kind: input, shape index: {}]
  %s3 = inlined_call_operand.hbm [shape: bf16[512,256], index: 3, kind: input, shape index: {}]
  %s4 = inlined_call_operand.vmem [shape: f32[1,256], index: 4, kind: input, shape index: {}]
  %s5 = inlined_call_operand.hbm [shape: bf16[256,128], index: 5, kind: input, shape index: {}]
  %s6 = inlined_call_operand.vmem [shape: f32[1,128], index: 6, kind: input, shape index: {}]
  %s7 = inlined_call_operand.vmem [shape: f32[1,128], index: 7, kind: input, shape index: {}]
  %s8 = inlined_call_operand.<no memory space> [shape: f32[1,1], index: 8, kind: input, shape index: {}]
  %s9 = inlined_call_operand.hbm [shape: f32[8,128], index: 9, kind: output, shape index: {}]
  %s10 = sld [smem:[#allocation0]]
  $region62: #{tpu_custom_call.1} parent=0
    _
  %s12 = ssub.s32 1, %s10
  %s13 = scalar_select 0, %s12, %s10
  %v14 = vstv %s8
  %15 = vst [vmem:[#allocation2] sm:$0x1] %v14
  $region1: #{tpu_custom_call.1} parent=0
    #allocation3 [shape = 'u8[14336]{0}', space=vmem, size = 0x3800, scoped, tag = 'input window, operand 0, single buffered']
    #allocation4 [shape = 's32[1]{0}', space=sflag, size = 0x4, scoped, tag = 'scoped memory for tpu_custom_call.1']
    #allocation5 [shape = 's32[1]{0}', space=sflag, size = 0x4, scoped, tag = 'scoped memory for tpu_custom_call.1']
    #allocation6 [shape = 'u8[917504]{0}', space=vmem, size = 0xe0000, scoped, tag = 'input window, operand 1, single buffered']
    #allocation7 [shape = 's32[1]{0}', space=sflag, size = 0x4, scoped, tag = 'scoped memory for tpu_custom_call.1']
    #allocation8 [shape = 'u8[262144]{0}', space=vmem, size = 0x40000, scoped, tag = 'input window, operand 3, single buffered']
    #allocation9 [shape = 'u8[65536]{0}', space=vmem, size = 0x10000, scoped, tag = 'input window, operand 5, single buffered']
    #allocation10 [shape = 's32[1]{0}', space=sflag, size = 0x4, scoped, tag = 'scoped memory for tpu_custom_call.1']
    #allocation11 [shape = 'u8[4096]{0}', space=vmem, size = 0x1000, scoped, tag = 'output window, operand 0, single buffered']
    %16 = vsyncpa [#allocation4], 0
    %17 = vsyncpa [#allocation7], 0
    %18 = vsyncpa [#allocation10], 0
    %19 = vsyncpa [#allocation5], 0
    // Predicated region
    $region2: #{tpu_custom_call.1} parent=1 // pred_check
      _
    $region3: #{tpu_custom_call.1} parent=1 // pred_check_branch
      %21 = sbr.rel (0) target = $region5
    $region4: #{tpu_custom_call.1} parent=1 // pred_region
      %s23 = ssub.s32 448, 448
      %24 = vsyncadd [#allocation4], %s23
      %s26 = sshll.u32 [#allocation3], 4
      %s27 = int_to_ptr.vmem [resolvable:$true] %s26
      %29 = dma.hbm_to_vmem [thread:$0]  %s0, 448, %s27, [#allocation4]
    $region5: #{tpu_custom_call.1} parent=1 // pred_fallthru
      _
    // Predicated region
    $region6: #{tpu_custom_call.1} parent=1 // pred_check
      _
    $region7: #{tpu_custom_call.1} parent=1 // pred_check_branch
      %31 = sbr.rel (0) target = $region9
    $region8: #{tpu_custom_call.1} parent=1 // pred_region
      %s33 = ssub.s32 28672, 28672
      %34 = vsyncadd [#allocation7], %s33
      %s35 = sshll.u32 [#allocation6], 4
      %s36 = int_to_ptr.vmem [resolvable:$true] %s35
      %41 = dma.hbm_to_vmem [thread:$0]  %s1, 28672, %s36, [#allocation7], 256, 256, 16
    $region9: #{tpu_custom_call.1} parent=1 // pred_fallthru
      _
    // Predicated region
    $region10: #{tpu_custom_call.1} parent=1 // pred_check
      _
    $region11: #{tpu_custom_call.1} parent=1 // pred_check_branch
      %43 = sbr.rel (0) target = $region13
    $region12: #{tpu_custom_call.1} parent=1 // pred_region
      _
    $region13: #{tpu_custom_call.1} parent=1 // pred_fallthru
      _
    // Predicated region
    $region14: #{tpu_custom_call.1} parent=1 // pred_check
      _
    $region15: #{tpu_custom_call.1} parent=1 // pred_check_branch
      %45 = sbr.rel (0) target = $region17
    $region16: #{tpu_custom_call.1} parent=1 // pred_region
      %s47 = ssub.s32 8192, 8192
      %48 = vsyncadd [#allocation7], %s47
      %s49 = sshll.u32 [#allocation8], 4
      %s50 = int_to_ptr.vmem [resolvable:$true] %s49
      %55 = dma.hbm_to_vmem [thread:$0]  %s3, 8192, %s50, [#allocation7], 128, 128, 8
    $region17: #{tpu_custom_call.1} parent=1 // pred_fallthru
      _
    // Predicated region
    $region18: #{tpu_custom_call.1} parent=1 // pred_check
      _
    $region19: #{tpu_custom_call.1} parent=1 // pred_check_branch
      %57 = sbr.rel (0) target = $region21
    $region20: #{tpu_custom_call.1} parent=1 // pred_region
      _
    $region21: #{tpu_custom_call.1} parent=1 // pred_fallthru
      _
    // Predicated region
    $region22: #{tpu_custom_call.1} parent=1 // pred_check
      _
    $region23: #{tpu_custom_call.1} parent=1 // pred_check_branch
      %59 = sbr.rel (0) target = $region25
    $region24: #{tpu_custom_call.1} parent=1 // pred_region
      %s61 = ssub.s32 2048, 2048
      %62 = vsyncadd [#allocation10], %s61
      %s63 = sshll.u32 [#allocation9], 4
      %s64 = int_to_ptr.vmem [resolvable:$true] %s63
      %69 = dma.hbm_to_vmem [thread:$0]  %s5, 2048, %s64, [#allocation10], 64, 64, 4
    $region25: #{tpu_custom_call.1} parent=1 // pred_fallthru
      _
    // Predicated region
    $region26: #{tpu_custom_call.1} parent=1 // pred_check
      _
    $region27: #{tpu_custom_call.1} parent=1 // pred_check_branch
      %71 = sbr.rel (0) target = $region29
    $region28: #{tpu_custom_call.1} parent=1 // pred_region
      _
    $region29: #{tpu_custom_call.1} parent=1 // pred_fallthru
      _
    // Predicated region
    $region30: #{tpu_custom_call.1} parent=1 // pred_check
      _
    $region31: #{tpu_custom_call.1} parent=1 // pred_check_branch
      %73 = sbr.rel (0) target = $region33
    $region32: #{tpu_custom_call.1} parent=1 // pred_region
      _
    $region33: #{tpu_custom_call.1} parent=1 // pred_fallthru
      _
    // Predicated region
    $region34: #{tpu_custom_call.1} parent=1 // pred_check
      _
    $region35: #{tpu_custom_call.1} parent=1 // pred_check_branch
      %75 = sbr.rel (0) target = $region37
    $region36: #{tpu_custom_call.1} parent=1 // pred_region
      _
    $region37: #{tpu_custom_call.1} parent=1 // pred_fallthru
      _
    // Predicated region
    $region38: #{tpu_custom_call.1} parent=1 // pred_check
      _
    $region39: #{tpu_custom_call.1} parent=1 // pred_check_branch
      %77 = sbr.rel (0) target = $region41
    $region40: #{tpu_custom_call.1} parent=1 // pred_region
      %78 = dma.done [#allocation4], 448
    $region41: #{tpu_custom_call.1} parent=1 // pred_fallthru
      _
    // Predicated region
    $region42: #{tpu_custom_call.1} parent=1 // pred_check
      _
    $region43: #{tpu_custom_call.1} parent=1 // pred_check_branch
      %80 = sbr.rel (0) target = $region45
    $region44: #{tpu_custom_call.1} parent=1 // pred_region
      %81 = dma.done [#allocation7], 28672
    $region45: #{tpu_custom_call.1} parent=1 // pred_fallthru
      _
    // Predicated region
    $region46: #{tpu_custom_call.1} parent=1 // pred_check
      _
    $region47: #{tpu_custom_call.1} parent=1 // pred_check_branch
      %83 = sbr.rel (0) target = $region49
    $region48: #{tpu_custom_call.1} parent=1 // pred_region
      %84 = dma.done [#allocation7], 8192
    $region49: #{tpu_custom_call.1} parent=1 // pred_fallthru
      _
    // Predicated region
    $region50: #{tpu_custom_call.1} parent=1 // pred_check
      _
    $region51: #{tpu_custom_call.1} parent=1 // pred_check_branch
      %86 = sbr.rel (0) target = $region53
    $region52: #{tpu_custom_call.1} parent=1 // pred_region
      %87 = dma.done [#allocation10], 2048
    $region53: #{tpu_custom_call.1} parent=1 // pred_fallthru
      _
    %v89 = vld [vmem:[#allocation3] sm:$0xff]
    %v90 = vld [vmem:[#allocation3 + $0x8] sm:$0xff]
    %v91 = vld [vmem:[#allocation3 + $0x10] sm:$0xff]
    %v92 = vld [vmem:[#allocation3 + $0x18] sm:$0xf]
    %v93 = vld [vmem:[#allocation6] sm:$0xff]
    %v94 = vld [vmem:[#allocation6 + $0x8] sm:$0xff]
    %v95 = vld [vmem:[#allocation6 + $0x10] sm:$0xff]
    %v96 = vld [vmem:[#allocation6 + $0x18] sm:$0xff]
    %v97 = vld [vmem:[#allocation6 + $0x20] sm:$0xff]
    %v98 = vld [vmem:[#allocation6 + $0x28] sm:$0xff]
    %v99 = vld [vmem:[#allocation6 + $0x30] sm:$0xff]
    %v100 = vld [vmem:[#allocation6 + $0x38] sm:$0xff]
    %v101 = vld [vmem:[#allocation6 + $0x40] sm:$0xff]
    %v102 = vld [vmem:[#allocation6 + $0x48] sm:$0xff]
    %v103 = vld [vmem:[#allocation6 + $0x50] sm:$0xff]
    %v104 = vld [vmem:[#allocation6 + $0x58] sm:$0xff]
    %v105 = vld [vmem:[#allocation6 + $0x60] sm:$0xff]
    %v106 = vld [vmem:[#allocation6 + $0x68] sm:$0xff]
    %v107 = vld [vmem:[#allocation6 + $0x70] sm:$0xff]
    %v108 = vld [vmem:[#allocation6 + $0x78] sm:$0xff]
    %v109 = vld [vmem:[#allocation6 + $0x80] sm:$0xff]
    %v110 = vld [vmem:[#allocation6 + $0x88] sm:$0xff]
    %v111 = vld [vmem:[#allocation6 + $0x90] sm:$0xff]
    %v112 = vld [vmem:[#allocation6 + $0x98] sm:$0xff]
    %v113 = vld [vmem:[#allocation6 + $0xa0] sm:$0xff]
    %v114 = vld [vmem:[#allocation6 + $0xa8] sm:$0xff]
    %v115 = vld [vmem:[#allocation6 + $0xb0] sm:$0xff]
    %v116 = vld [vmem:[#allocation6 + $0xb8] sm:$0xff]
    %v117 = vld [vmem:[#allocation6 + $0xc0] sm:$0xff]
    %v118 = vld [vmem:[#allocation6 + $0xc8] sm:$0xff]
    %v119 = vld [vmem:[#allocation6 + $0xd0] sm:$0xff]
    %v120 = vld [vmem:[#allocation6 + $0xd8] sm:$0xff]
    %v121 = vld [vmem:[#allocation6 + $0xe0] sm:$0xff]
    %v122 = vld [vmem:[#allocation6 + $0xe8] sm:$0xff]
    %v123 = vld [vmem:[#allocation6 + $0xf0] sm:$0xff]
    %v124 = vld [vmem:[#allocation6 + $0xf8] sm:$0xff]
    %v125 = vld [vmem:[#allocation6 + $0x100] sm:$0xff]
    %v126 = vld [vmem:[#allocation6 + $0x108] sm:$0xff]
    %v127 = vld [vmem:[#allocation6 + $0x110] sm:$0xff]
    %v128 = vld [vmem:[#allocation6 + $0x118] sm:$0xff]
    %v129 = vld [vmem:[#allocation6 + $0x120] sm:$0xff]
    %v130 = vld [vmem:[#allocation6 + $0x128] sm:$0xff]
    %v131 = vld [vmem:[#allocation6 + $0x130] sm:$0xff]
    %v132 = vld [vmem:[#allocation6 + $0x138] sm:$0xff]
    %v133 = vld [vmem:[#allocation6 + $0x140] sm:$0xff]
    %v134 = vld [vmem:[#allocation6 + $0x148] sm:$0xff]
    %v135 = vld [vmem:[#allocation6 + $0x150] sm:$0xff]
    %v136 = vld [vmem:[#allocation6 + $0x158] sm:$0xff]
    %v137 = vld [vmem:[#allocation6 + $0x160] sm:$0xff]
    %v138 = vld [vmem:[#allocation6 + $0x168] sm:$0xff]
    %v139 = vld [vmem:[#allocation6 + $0x170] sm:$0xff]
    %v140 = vld [vmem:[#allocation6 + $0x178] sm:$0xff]
    %v141 = vld [vmem:[#allocation6 + $0x180] sm:$0xff]
    %v142 = vld [vmem:[#allocation6 + $0x188] sm:$0xff]
    %v143 = vld [vmem:[#allocation6 + $0x190] sm:$0xff]
    %v144 = vld [vmem:[#allocation6 + $0x198] sm:$0xff]
    %v145 = vld [vmem:[#allocation6 + $0x1a0] sm:$0xff]
    %v146 = vld [vmem:[#allocation6 + $0x1a8] sm:$0xff]
    %v147 = vld [vmem:[#allocation6 + $0x1b0] sm:$0xff]
    %v148 = vld [vmem:[#allocation6 + $0x1b8] sm:$0xff]
    %v149 = vld [vmem:[#allocation6 + $0x1c0] sm:$0xff]
    %v150 = vld [vmem:[#allocation6 + $0x1c8] sm:$0xff]
    %v151 = vld [vmem:[#allocation6 + $0x1d0] sm:$0xff]
    %v152 = vld [vmem:[#allocation6 + $0x1d8] sm:$0xff]
    %v153 = vld [vmem:[#allocation6 + $0x1e0] sm:$0xff]
    %v154 = vld [vmem:[#allocation6 + $0x1e8] sm:$0xff]
    %v155 = vld [vmem:[#allocation6 + $0x1f0] sm:$0xff]
    %v156 = vld [vmem:[#allocation6 + $0x1f8] sm:$0xff]
    %v157 = vld [vmem:[#allocation6 + $0x200] sm:$0xff]
    %v158 = vld [vmem:[#allocation6 + $0x208] sm:$0xff]
    %v159 = vld [vmem:[#allocation6 + $0x210] sm:$0xff]
    %v160 = vld [vmem:[#allocation6 + $0x218] sm:$0xff]
    %v161 = vld [vmem:[#allocation6 + $0x220] sm:$0xff]
    %v162 = vld [vmem:[#allocation6 + $0x228] sm:$0xff]
    %v163 = vld [vmem:[#allocation6 + $0x230] sm:$0xff]
    %v164 = vld [vmem:[#allocation6 + $0x238] sm:$0xff]
    %v165 = vld [vmem:[#allocation6 + $0x240] sm:$0xff]
    %v166 = vld [vmem:[#allocation6 + $0x248] sm:$0xff]
    %v167 = vld [vmem:[#allocation6 + $0x250] sm:$0xff]
    %v168 = vld [vmem:[#allocation6 + $0x258] sm:$0xff]
    %v169 = vld [vmem:[#allocation6 + $0x260] sm:$0xff]
    %v170 = vld [vmem:[#allocation6 + $0x268] sm:$0xff]
    %v171 = vld [vmem:[#allocation6 + $0x270] sm:$0xff]
    %v172 = vld [vmem:[#allocation6 + $0x278] sm:$0xff]
    %v173 = vld [vmem:[#allocation6 + $0x280] sm:$0xff]
    %v174 = vld [vmem:[#allocation6 + $0x288] sm:$0xff]
    %v175 = vld [vmem:[#allocation6 + $0x290] sm:$0xff]
    %v176 = vld [vmem:[#allocation6 + $0x298] sm:$0xff]
    %v177 = vld [vmem:[#allocation6 + $0x2a0] sm:$0xff]
    %v178 = vld [vmem:[#allocation6 + $0x2a8] sm:$0xff]
    %v179 = vld [vmem:[#allocation6 + $0x2b0] sm:$0xff]
    %v180 = vld [vmem:[#allocation6 + $0x2b8] sm:$0xff]
    %v181 = vld [vmem:[#allocation6 + $0x2c0] sm:$0xff]
    %v182 = vld [vmem:[#allocation6 + $0x2c8] sm:$0xff]
    %v183 = vld [vmem:[#allocation6 + $0x2d0] sm:$0xff]
    %v184 = vld [vmem:[#allocation6 + $0x2d8] sm:$0xff]
    %v185 = vld [vmem:[#allocation6 + $0x2e0] sm:$0xff]
    %v186 = vld [vmem:[#allocation6 + $0x2e8] sm:$0xff]
    %v187 = vld [vmem:[#allocation6 + $0x2f0] sm:$0xff]
    %v188 = vld [vmem:[#allocation6 + $0x2f8] sm:$0xff]
    %v189 = vld [vmem:[#allocation6 + $0x300] sm:$0xff]
    %v190 = vld [vmem:[#allocation6 + $0x308] sm:$0xff]
    %v191 = vld [vmem:[#allocation6 + $0x310] sm:$0xff]
    %v192 = vld [vmem:[#allocation6 + $0x318] sm:$0xff]
    %v193 = vld [vmem:[#allocation6 + $0x320] sm:$0xff]
    %v194 = vld [vmem:[#allocation6 + $0x328] sm:$0xff]
    %v195 = vld [vmem:[#allocation6 + $0x330] sm:$0xff]
    %v196 = vld [vmem:[#allocation6 + $0x338] sm:$0xff]
    %v197 = vld [vmem:[#allocation6 + $0x340] sm:$0xff]
    %v198 = vld [vmem:[#allocation6 + $0x348] sm:$0xff]
    %v199 = vld [vmem:[#allocation6 + $0x350] sm:$0xff]
    %v200 = vld [vmem:[#allocation6 + $0x358] sm:$0xff]
    %v201 = vld [vmem:[#allocation6 + $0x360] sm:$0xff]
    %v202 = vld [vmem:[#allocation6 + $0x368] sm:$0xff]
    %v203 = vld [vmem:[#allocation6 + $0x370] sm:$0xff]
    %v204 = vld [vmem:[#allocation6 + $0x378] sm:$0xff]
    %v205 = vld [vmem:[#allocation6 + $0x380] sm:$0xff]
    %v206 = vld [vmem:[#allocation6 + $0x388] sm:$0xff]
    %v207 = vld [vmem:[#allocation6 + $0x390] sm:$0xff]
    %v208 = vld [vmem:[#allocation6 + $0x398] sm:$0xff]
    %v209 = vld [vmem:[#allocation6 + $0x3a0] sm:$0xff]
    %v210 = vld [vmem:[#allocation6 + $0x3a8] sm:$0xff]
    %v211 = vld [vmem:[#allocation6 + $0x3b0] sm:$0xff]
    %v212 = vld [vmem:[#allocation6 + $0x3b8] sm:$0xff]
    %v213 = vld [vmem:[#allocation6 + $0x3c0] sm:$0xff]
    %v214 = vld [vmem:[#allocation6 + $0x3c8] sm:$0xff]
    %v215 = vld [vmem:[#allocation6 + $0x3d0] sm:$0xff]
    %v216 = vld [vmem:[#allocation6 + $0x3d8] sm:$0xff]
    %v217 = vld [vmem:[#allocation6 + $0x3e0] sm:$0xff]
    %v218 = vld [vmem:[#allocation6 + $0x3e8] sm:$0xff]
    %v219 = vld [vmem:[#allocation6 + $0x3f0] sm:$0xff]
    %v220 = vld [vmem:[#allocation6 + $0x3f8] sm:$0xff]
    %v221 = vld [vmem:[#allocation6 + $0x400] sm:$0xff]
    %v222 = vld [vmem:[#allocation6 + $0x408] sm:$0xff]
    %v223 = vld [vmem:[#allocation6 + $0x410] sm:$0xff]
    %v224 = vld [vmem:[#allocation6 + $0x418] sm:$0xff]
    %v225 = vld [vmem:[#allocation6 + $0x420] sm:$0xff]
    %v226 = vld [vmem:[#allocation6 + $0x428] sm:$0xff]
    %v227 = vld [vmem:[#allocation6 + $0x430] sm:$0xff]
    %v228 = vld [vmem:[#allocation6 + $0x438] sm:$0xff]
    %v229 = vld [vmem:[#allocation6 + $0x440] sm:$0xff]
    %v230 = vld [vmem:[#allocation6 + $0x448] sm:$0xff]
    %v231 = vld [vmem:[#allocation6 + $0x450] sm:$0xff]
    %v232 = vld [vmem:[#allocation6 + $0x458] sm:$0xff]
    %v233 = vld [vmem:[#allocation6 + $0x460] sm:$0xff]
    %v234 = vld [vmem:[#allocation6 + $0x468] sm:$0xff]
    %v235 = vld [vmem:[#allocation6 + $0x470] sm:$0xff]
    %v236 = vld [vmem:[#allocation6 + $0x478] sm:$0xff]
    %v237 = vld [vmem:[#allocation6 + $0x480] sm:$0xff]
    %v238 = vld [vmem:[#allocation6 + $0x488] sm:$0xff]
    %v239 = vld [vmem:[#allocation6 + $0x490] sm:$0xff]
    %v240 = vld [vmem:[#allocation6 + $0x498] sm:$0xff]
    %v241 = vld [vmem:[#allocation6 + $0x4a0] sm:$0xff]
    %v242 = vld [vmem:[#allocation6 + $0x4a8] sm:$0xff]
    %v243 = vld [vmem:[#allocation6 + $0x4b0] sm:$0xff]
    %v244 = vld [vmem:[#allocation6 + $0x4b8] sm:$0xff]
    %v245 = vld [vmem:[#allocation6 + $0x4c0] sm:$0xff]
    %v246 = vld [vmem:[#allocation6 + $0x4c8] sm:$0xff]
    %v247 = vld [vmem:[#allocation6 + $0x4d0] sm:$0xff]
    %v248 = vld [vmem:[#allocation6 + $0x4d8] sm:$0xff]
    %v249 = vld [vmem:[#allocation6 + $0x4e0] sm:$0xff]
    %v250 = vld [vmem:[#allocation6 + $0x4e8] sm:$0xff]
    %v251 = vld [vmem:[#allocation6 + $0x4f0] sm:$0xff]
    %v252 = vld [vmem:[#allocation6 + $0x4f8] sm:$0xff]
    %v253 = vld [vmem:[#allocation6 + $0x500] sm:$0xff]
    %v254 = vld [vmem:[#allocation6 + $0x508] sm:$0xff]
    %v255 = vld [vmem:[#allocation6 + $0x510] sm:$0xff]
    %v256 = vld [vmem:[#allocation6 + $0x518] sm:$0xff]
    %v257 = vld [vmem:[#allocation6 + $0x520] sm:$0xff]
    %v258 = vld [vmem:[#allocation6 + $0x528] sm:$0xff]
    %v259 = vld [vmem:[#allocation6 + $0x530] sm:$0xff]
    %v260 = vld [vmem:[#allocation6 + $0x538] sm:$0xff]
    %v261 = vld [vmem:[#allocation6 + $0x540] sm:$0xff]
    %v262 = vld [vmem:[#allocation6 + $0x548] sm:$0xff]
    %v263 = vld [vmem:[#allocation6 + $0x550] sm:$0xff]
    %v264 = vld [vmem:[#allocation6 + $0x558] sm:$0xff]
    %v265 = vld [vmem:[#allocation6 + $0x560] sm:$0xff]
    %v266 = vld [vmem:[#allocation6 + $0x568] sm:$0xff]
    %v267 = vld [vmem:[#allocation6 + $0x570] sm:$0xff]
    %v268 = vld [vmem:[#allocation6 + $0x578] sm:$0xff]
    %v269 = vld [vmem:[#allocation6 + $0x580] sm:$0xff]
    %v270 = vld [vmem:[#allocation6 + $0x588] sm:$0xff]
    %v271 = vld [vmem:[#allocation6 + $0x590] sm:$0xff]
    %v272 = vld [vmem:[#allocation6 + $0x598] sm:$0xff]
    %v273 = vld [vmem:[#allocation6 + $0x5a0] sm:$0xff]
    %v274 = vld [vmem:[#allocation6 + $0x5a8] sm:$0xff]
    %v275 = vld [vmem:[#allocation6 + $0x5b0] sm:$0xff]
    %v276 = vld [vmem:[#allocation6 + $0x5b8] sm:$0xff]
    %v277 = vld [vmem:[#allocation6 + $0x5c0] sm:$0xff]
    %v278 = vld [vmem:[#allocation6 + $0x5c8] sm:$0xff]
    %v279 = vld [vmem:[#allocation6 + $0x5d0] sm:$0xff]
    %v280 = vld [vmem:[#allocation6 + $0x5d8] sm:$0xff]
    %v281 = vld [vmem:[#allocation6 + $0x5e0] sm:$0xff]
    %v282 = vld [vmem:[#allocation6 + $0x5e8] sm:$0xff]
    %v283 = vld [vmem:[#allocation6 + $0x5f0] sm:$0xff]
    %v284 = vld [vmem:[#allocation6 + $0x5f8] sm:$0xff]
    %v285 = vld [vmem:[#allocation6 + $0x600] sm:$0xff]
    %v286 = vld [vmem:[#allocation6 + $0x608] sm:$0xff]
    %v287 = vld [vmem:[#allocation6 + $0x610] sm:$0xff]
    %v288 = vld [vmem:[#allocation6 + $0x618] sm:$0xff]
    %v289 = vld [vmem:[#allocation6 + $0x620] sm:$0xff]
    %v290 = vld [vmem:[#allocation6 + $0x628] sm:$0xff]
    %v291 = vld [vmem:[#allocation6 + $0x630] sm:$0xff]
    %v292 = vld [vmem:[#allocation6 + $0x638] sm:$0xff]
    %v293 = vld [vmem:[#allocation6 + $0x640] sm:$0xff]
    %v294 = vld [vmem:[#allocation6 + $0x648] sm:$0xff]
    %v295 = vld [vmem:[#allocation6 + $0x650] sm:$0xff]
    %v296 = vld [vmem:[#allocation6 + $0x658] sm:$0xff]
    %v297 = vld [vmem:[#allocation6 + $0x660] sm:$0xff]
    %v298 = vld [vmem:[#allocation6 + $0x668] sm:$0xff]
    %v299 = vld [vmem:[#allocation6 + $0x670] sm:$0xff]
    %v300 = vld [vmem:[#allocation6 + $0x678] sm:$0xff]
    %v301 = vld [vmem:[#allocation6 + $0x680] sm:$0xff]
    %v302 = vld [vmem:[#allocation6 + $0x688] sm:$0xff]
    %v303 = vld [vmem:[#allocation6 + $0x690] sm:$0xff]
    %v304 = vld [vmem:[#allocation6 + $0x698] sm:$0xff]
    %v305 = vld [vmem:[#allocation6 + $0x6a0] sm:$0xff]
    %v306 = vld [vmem:[#allocation6 + $0x6a8] sm:$0xff]
    %v307 = vld [vmem:[#allocation6 + $0x6b0] sm:$0xff]
    %v308 = vld [vmem:[#allocation6 + $0x6b8] sm:$0xff]
    %v309 = vld [vmem:[#allocation6 + $0x6c0] sm:$0xff]
    %v310 = vld [vmem:[#allocation6 + $0x6c8] sm:$0xff]
    %v311 = vld [vmem:[#allocation6 + $0x6d0] sm:$0xff]
    %v312 = vld [vmem:[#allocation6 + $0x6d8] sm:$0xff]
    %v313 = vld [vmem:[#allocation6 + $0x6e0] sm:$0xff]
    %v314 = vld [vmem:[#allocation6 + $0x6e8] sm:$0xff]
    %v315 = vld [vmem:[#allocation6 + $0x6f0] sm:$0xff]
    %v316 = vld [vmem:[#allocation6 + $0x6f8] sm:$0xff]
    %v317 = vld [vmem:[%s2] sm:$0xf]
    %v319 = vlaneseq
    %v320 = vshrl.u32 %v319, 7
    %v321 = vsub.s32 0, %v320
    %v322 = vrot.slane %v317, %v321
    %v323 = vlaneseq
    %v324 = vshrl.u32 %v323, 7
    %v325 = vsub.s32 1, %v324
    %v326 = vrot.slane %v317, %v325
    %v327 = vlaneseq
    %v328 = vshrl.u32 %v327, 7
    %v329 = vsub.s32 2, %v328
    %v330 = vrot.slane %v317, %v329
    %v331 = vlaneseq
    %v332 = vshrl.u32 %v331, 7
    %v333 = vsub.s32 3, %v332
    %v334 = vrot.slane %v317, %v333
    %v343 = vunpack.c.l.b16 %v89
    %v344 = vunpack.c.h.b16 %v89
    %v345 = vunpack.c.l.b16 %v90
    %v346 = vunpack.c.h.b16 %v90
    %v347 = vunpack.c.l.b16 %v91
    %v348 = vunpack.c.h.b16 %v91
    %v349 = vunpack.c.l.b16 %v92
    %v350 = vpack.c.b16 %v343, %v343
    %v351 = vpack.c.b16 %v344, %v344
    %v352 = vpack.c.b16 %v345, %v345
    %v353 = vpack.c.b16 %v346, %v346
    %v354 = vpack.c.b16 %v347, %v347
    %v355 = vpack.c.b16 %v348, %v348
    %v356 = vpack.c.b16 %v349, %v349
    %v588 = vunpack.c.l.b16 %v93
    %v589 = vunpack.c.h.b16 %v93
    %v590 = vunpack.c.l.b16 %v94
    %v591 = vunpack.c.h.b16 %v94
    %v592 = vunpack.c.l.b16 %v95
    %v593 = vunpack.c.h.b16 %v95
    %v594 = vunpack.c.l.b16 %v96
    %v595 = vunpack.c.h.b16 %v96
    %v596 = vunpack.c.l.b16 %v97
    %v597 = vunpack.c.h.b16 %v97
    %v598 = vunpack.c.l.b16 %v98
    %v599 = vunpack.c.h.b16 %v98
    %v600 = vunpack.c.l.b16 %v99
    %v601 = vunpack.c.h.b16 %v99
    %v602 = vunpack.c.l.b16 %v100
    %v603 = vunpack.c.h.b16 %v100
    %v604 = vunpack.c.l.b16 %v101
    %v605 = vunpack.c.h.b16 %v101
    %v606 = vunpack.c.l.b16 %v102
    %v607 = vunpack.c.h.b16 %v102
    %v608 = vunpack.c.l.b16 %v103
    %v609 = vunpack.c.h.b16 %v103
    %v610 = vunpack.c.l.b16 %v104
    %v611 = vunpack.c.h.b16 %v104
    %v612 = vunpack.c.l.b16 %v105
    %v613 = vunpack.c.h.b16 %v105
    %v614 = vunpack.c.l.b16 %v106
    %v615 = vunpack.c.h.b16 %v106
    %v616 = vunpack.c.l.b16 %v107
    %v617 = vunpack.c.h.b16 %v107
    %v618 = vunpack.c.l.b16 %v108
    %v619 = vunpack.c.h.b16 %v108
    %v620 = vunpack.c.l.b16 %v109
    %v621 = vunpack.c.h.b16 %v109
    %v622 = vunpack.c.l.b16 %v110
    %v623 = vunpack.c.h.b16 %v110
    %v624 = vunpack.c.l.b16 %v111
    %v625 = vunpack.c.h.b16 %v111
    %v626 = vunpack.c.l.b16 %v112
    %v627 = vunpack.c.h.b16 %v112
    %v628 = vunpack.c.l.b16 %v113
    %v629 = vunpack.c.h.b16 %v113
    %v630 = vunpack.c.l.b16 %v114
    %v631 = vunpack.c.h.b16 %v114
    %v632 = vunpack.c.l.b16 %v115
    %v633 = vunpack.c.h.b16 %v115
    %v634 = vunpack.c.l.b16 %v116
    %v635 = vunpack.c.h.b16 %v116
    %v636 = vunpack.c.l.b16 %v117
    %v637 = vunpack.c.h.b16 %v117
    %v638 = vunpack.c.l.b16 %v118
    %v639 = vunpack.c.h.b16 %v118
    %v640 = vunpack.c.l.b16 %v119
    %v641 = vunpack.c.h.b16 %v119
    %v642 = vunpack.c.l.b16 %v120
    %v643 = vunpack.c.h.b16 %v120
    %v644 = vunpack.c.l.b16 %v121
    %v645 = vunpack.c.h.b16 %v121
    %v646 = vunpack.c.l.b16 %v122
    %v647 = vunpack.c.h.b16 %v122
    %v648 = vunpack.c.l.b16 %v123
    %v649 = vunpack.c.h.b16 %v123
    %v650 = vunpack.c.l.b16 %v124
    %v651 = vunpack.c.h.b16 %v124
    %v652 = vunpack.c.l.b16 %v125
    %v653 = vunpack.c.h.b16 %v125
    %v654 = vunpack.c.l.b16 %v126
    %v655 = vunpack.c.h.b16 %v126
    %v656 = vunpack.c.l.b16 %v127
    %v657 = vunpack.c.h.b16 %v127
    %v658 = vunpack.c.l.b16 %v128
    %v659 = vunpack.c.h.b16 %v128
    %v660 = vunpack.c.l.b16 %v129
    %v661 = vunpack.c.h.b16 %v129
    %v662 = vunpack.c.l.b16 %v130
    %v663 = vunpack.c.h.b16 %v130
    %v664 = vunpack.c.l.b16 %v131
    %v665 = vunpack.c.h.b16 %v131
    %v666 = vunpack.c.l.b16 %v132
    %v667 = vunpack.c.h.b16 %v132
    %v668 = vunpack.c.l.b16 %v133
    %v669 = vunpack.c.h.b16 %v133
    %v670 = vunpack.c.l.b16 %v134
    %v671 = vunpack.c.h.b16 %v134
    %v672 = vunpack.c.l.b16 %v135
    %v673 = vunpack.c.h.b16 %v135
    %v674 = vunpack.c.l.b16 %v136
    %v675 = vunpack.c.h.b16 %v136
    %v676 = vunpack.c.l.b16 %v137
    %v677 = vunpack.c.h.b16 %v137
    %v678 = vunpack.c.l.b16 %v138
    %v679 = vunpack.c.h.b16 %v138
    %v680 = vunpack.c.l.b16 %v139
    %v681 = vunpack.c.h.b16 %v139
    %v682 = vunpack.c.l.b16 %v140
    %v683 = vunpack.c.h.b16 %v140
    %v684 = vunpack.c.l.b16 %v141
    %v685 = vunpack.c.h.b16 %v141
    %v686 = vunpack.c.l.b16 %v142
    %v687 = vunpack.c.h.b16 %v142
    %v688 = vunpack.c.l.b16 %v143
    %v689 = vunpack.c.h.b16 %v143
    %v690 = vunpack.c.l.b16 %v144
    %v691 = vunpack.c.h.b16 %v144
    %v692 = vunpack.c.l.b16 %v145
    %v693 = vunpack.c.h.b16 %v145
    %v694 = vunpack.c.l.b16 %v146
    %v695 = vunpack.c.h.b16 %v146
    %v696 = vunpack.c.l.b16 %v147
    %v697 = vunpack.c.h.b16 %v147
    %v698 = vunpack.c.l.b16 %v148
    %v699 = vunpack.c.h.b16 %v148
    %v700 = vunpack.c.l.b16 %v149
    %v701 = vunpack.c.h.b16 %v149
    %v702 = vunpack.c.l.b16 %v150
    %v703 = vunpack.c.h.b16 %v150
    %v704 = vunpack.c.l.b16 %v151
    %v705 = vunpack.c.h.b16 %v151
    %v706 = vunpack.c.l.b16 %v152
    %v707 = vunpack.c.h.b16 %v152
    %v708 = vunpack.c.l.b16 %v153
    %v709 = vunpack.c.h.b16 %v153
    %v710 = vunpack.c.l.b16 %v154
    %v711 = vunpack.c.h.b16 %v154
    %v712 = vunpack.c.l.b16 %v155
    %v713 = vunpack.c.h.b16 %v155
    %v714 = vunpack.c.l.b16 %v156
    %v715 = vunpack.c.h.b16 %v156
    %v716 = vunpack.c.l.b16 %v157
    %v717 = vunpack.c.h.b16 %v157
    %v718 = vunpack.c.l.b16 %v158
    %v719 = vunpack.c.h.b16 %v158
    %v720 = vunpack.c.l.b16 %v159
    %v721 = vunpack.c.h.b16 %v159
    %v722 = vunpack.c.l.b16 %v160
    %v723 = vunpack.c.h.b16 %v160
    %v724 = vunpack.c.l.b16 %v161
    %v725 = vunpack.c.h.b16 %v161
    %v726 = vunpack.c.l.b16 %v162
    %v727 = vunpack.c.h.b16 %v162
    %v728 = vunpack.c.l.b16 %v163
    %v729 = vunpack.c.h.b16 %v163
    %v730 = vunpack.c.l.b16 %v164
    %v731 = vunpack.c.h.b16 %v164
    %v732 = vunpack.c.l.b16 %v165
    %v733 = vunpack.c.h.b16 %v165
    %v734 = vunpack.c.l.b16 %v166
    %v735 = vunpack.c.h.b16 %v166
    %v736 = vunpack.c.l.b16 %v167
    %v737 = vunpack.c.h.b16 %v167
    %v738 = vunpack.c.l.b16 %v168
    %v739 = vunpack.c.h.b16 %v168
    %v740 = vunpack.c.l.b16 %v169
    %v741 = vunpack.c.h.b16 %v169
    %v742 = vunpack.c.l.b16 %v170
    %v743 = vunpack.c.h.b16 %v170
    %v744 = vunpack.c.l.b16 %v171
    %v745 = vunpack.c.h.b16 %v171
    %v746 = vunpack.c.l.b16 %v172
    %v747 = vunpack.c.h.b16 %v172
    %v748 = vunpack.c.l.b16 %v173
    %v749 = vunpack.c.h.b16 %v173
    %v750 = vunpack.c.l.b16 %v174
    %v751 = vunpack.c.h.b16 %v174
    %v752 = vunpack.c.l.b16 %v175
    %v753 = vunpack.c.h.b16 %v175
    %v754 = vunpack.c.l.b16 %v176
    %v755 = vunpack.c.h.b16 %v176
    %v756 = vunpack.c.l.b16 %v177
    %v757 = vunpack.c.h.b16 %v177
    %v758 = vunpack.c.l.b16 %v178
    %v759 = vunpack.c.h.b16 %v178
    %v760 = vunpack.c.l.b16 %v179
    %v761 = vunpack.c.h.b16 %v179
    %v762 = vunpack.c.l.b16 %v180
    %v763 = vunpack.c.h.b16 %v180
    %v764 = vunpack.c.l.b16 %v181
    %v765 = vunpack.c.h.b16 %v181
    %v766 = vunpack.c.l.b16 %v182
    %v767 = vunpack.c.h.b16 %v182
    %v768 = vunpack.c.l.b16 %v183
    %v769 = vunpack.c.h.b16 %v183
    %v770 = vunpack.c.l.b16 %v184
    %v771 = vunpack.c.h.b16 %v184
    %v772 = vunpack.c.l.b16 %v185
    %v773 = vunpack.c.h.b16 %v185
    %v774 = vunpack.c.l.b16 %v186
    %v775 = vunpack.c.h.b16 %v186
    %v776 = vunpack.c.l.b16 %v187
    %v777 = vunpack.c.h.b16 %v187
    %v778 = vunpack.c.l.b16 %v188
    %v779 = vunpack.c.h.b16 %v188
    %v780 = vunpack.c.l.b16 %v189
    %v781 = vunpack.c.h.b16 %v189
    %v782 = vunpack.c.l.b16 %v190
    %v783 = vunpack.c.h.b16 %v190
    %v784 = vunpack.c.l.b16 %v191
    %v785 = vunpack.c.h.b16 %v191
    %v786 = vunpack.c.l.b16 %v192
    %v787 = vunpack.c.h.b16 %v192
    %v788 = vunpack.c.l.b16 %v193
    %v789 = vunpack.c.h.b16 %v193
    %v790 = vunpack.c.l.b16 %v194
    %v791 = vunpack.c.h.b16 %v194
    %v792 = vunpack.c.l.b16 %v195
    %v793 = vunpack.c.h.b16 %v195
    %v794 = vunpack.c.l.b16 %v196
    %v795 = vunpack.c.h.b16 %v196
    %v796 = vunpack.c.l.b16 %v197
    %v797 = vunpack.c.h.b16 %v197
    %v798 = vunpack.c.l.b16 %v198
    %v799 = vunpack.c.h.b16 %v198
    %v800 = vunpack.c.l.b16 %v199
    %v801 = vunpack.c.h.b16 %v199
    %v802 = vunpack.c.l.b16 %v200
    %v803 = vunpack.c.h.b16 %v200
    %v804 = vunpack.c.l.b16 %v201
    %v805 = vunpack.c.h.b16 %v201
    %v806 = vunpack.c.l.b16 %v202
    %v807 = vunpack.c.h.b16 %v202
    %v808 = vunpack.c.l.b16 %v203
    %v809 = vunpack.c.h.b16 %v203
    %v810 = vunpack.c.l.b16 %v204
    %v811 = vunpack.c.h.b16 %v204
    %v812 = vunpack.c.l.b16 %v205
    %v813 = vunpack.c.h.b16 %v205
    %v814 = vunpack.c.l.b16 %v206
    %v815 = vunpack.c.h.b16 %v206
    %v816 = vunpack.c.l.b16 %v207
    %v817 = vunpack.c.h.b16 %v207
    %v818 = vunpack.c.l.b16 %v208
    %v819 = vunpack.c.h.b16 %v208
    %v820 = vunpack.c.l.b16 %v209
    %v821 = vunpack.c.h.b16 %v209
    %v822 = vunpack.c.l.b16 %v210
    %v823 = vunpack.c.h.b16 %v210
    %v824 = vunpack.c.l.b16 %v211
    %v825 = vunpack.c.h.b16 %v211
    %v826 = vunpack.c.l.b16 %v212
    %v827 = vunpack.c.h.b16 %v212
    %v828 = vunpack.c.l.b16 %v213
    %v829 = vunpack.c.h.b16 %v213
    %v830 = vunpack.c.l.b16 %v214
    %v831 = vunpack.c.h.b16 %v214
    %v832 = vunpack.c.l.b16 %v215
    %v833 = vunpack.c.h.b16 %v215
    %v834 = vunpack.c.l.b16 %v216
    %v835 = vunpack.c.h.b16 %v216
    %v836 = vunpack.c.l.b16 %v217
    %v837 = vunpack.c.h.b16 %v217
    %v838 = vunpack.c.l.b16 %v218
    %v839 = vunpack.c.h.b16 %v218
    %v840 = vunpack.c.l.b16 %v219
    %v841 = vunpack.c.h.b16 %v219
    %v842 = vunpack.c.l.b16 %v220
    %v843 = vunpack.c.h.b16 %v220
    %v844 = vunpack.c.l.b16 %v221
    %v845 = vunpack.c.h.b16 %v221
    %v846 = vunpack.c.l.b16 %v222
    %v847 = vunpack.c.h.b16 %v222
    %v848 = vunpack.c.l.b16 %v223
    %v849 = vunpack.c.h.b16 %v223
    %v850 = vunpack.c.l.b16 %v224
    %v851 = vunpack.c.h.b16 %v224
    %v852 = vunpack.c.l.b16 %v225
    %v853 = vunpack.c.h.b16 %v225
    %v854 = vunpack.c.l.b16 %v226
    %v855 = vunpack.c.h.b16 %v226
    %v856 = vunpack.c.l.b16 %v227
    %v857 = vunpack.c.h.b16 %v227
    %v858 = vunpack.c.l.b16 %v228
    %v859 = vunpack.c.h.b16 %v228
    %v860 = vunpack.c.l.b16 %v229
    %v861 = vunpack.c.h.b16 %v229
    %v862 = vunpack.c.l.b16 %v230
    %v863 = vunpack.c.h.b16 %v230
    %v864 = vunpack.c.l.b16 %v231
    %v865 = vunpack.c.h.b16 %v231
    %v866 = vunpack.c.l.b16 %v232
    %v867 = vunpack.c.h.b16 %v232
    %v868 = vunpack.c.l.b16 %v233
    %v869 = vunpack.c.h.b16 %v233
    %v870 = vunpack.c.l.b16 %v234
    %v871 = vunpack.c.h.b16 %v234
    %v872 = vunpack.c.l.b16 %v235
    %v873 = vunpack.c.h.b16 %v235
    %v874 = vunpack.c.l.b16 %v236
    %v875 = vunpack.c.h.b16 %v236
    %v876 = vunpack.c.l.b16 %v237
    %v877 = vunpack.c.h.b16 %v237
    %v878 = vunpack.c.l.b16 %v238
    %v879 = vunpack.c.h.b16 %v238
    %v880 = vunpack.c.l.b16 %v239
    %v881 = vunpack.c.h.b16 %v239
    %v882 = vunpack.c.l.b16 %v240
    %v883 = vunpack.c.h.b16 %v240
    %v884 = vunpack.c.l.b16 %v241
    %v885 = vunpack.c.h.b16 %v241
    %v886 = vunpack.c.l.b16 %v242
    %v887 = vunpack.c.h.b16 %v242
    %v888 = vunpack.c.l.b16 %v243
    %v889 = vunpack.c.h.b16 %v243
    %v890 = vunpack.c.l.b16 %v244
    %v891 = vunpack.c.h.b16 %v244
    %v892 = vunpack.c.l.b16 %v245
    %v893 = vunpack.c.h.b16 %v245
    %v894 = vunpack.c.l.b16 %v246
    %v895 = vunpack.c.h.b16 %v246
    %v896 = vunpack.c.l.b16 %v247
    %v897 = vunpack.c.h.b16 %v247
    %v898 = vunpack.c.l.b16 %v248
    %v899 = vunpack.c.h.b16 %v248
    %v900 = vunpack.c.l.b16 %v249
    %v901 = vunpack.c.h.b16 %v249
    %v902 = vunpack.c.l.b16 %v250
    %v903 = vunpack.c.h.b16 %v250
    %v904 = vunpack.c.l.b16 %v251
    %v905 = vunpack.c.h.b16 %v251
    %v906 = vunpack.c.l.b16 %v252
    %v907 = vunpack.c.h.b16 %v252
    %v908 = vunpack.c.l.b16 %v253
    %v909 = vunpack.c.h.b16 %v253
    %v910 = vunpack.c.l.b16 %v254
    %v911 = vunpack.c.h.b16 %v254
    %v912 = vunpack.c.l.b16 %v255
    %v913 = vunpack.c.h.b16 %v255
    %v914 = vunpack.c.l.b16 %v256
    %v915 = vunpack.c.h.b16 %v256
    %v916 = vunpack.c.l.b16 %v257
    %v917 = vunpack.c.h.b16 %v257
    %v918 = vunpack.c.l.b16 %v258
    %v919 = vunpack.c.h.b16 %v258
    %v920 = vunpack.c.l.b16 %v259
    %v921 = vunpack.c.h.b16 %v259
    %v922 = vunpack.c.l.b16 %v260
    %v923 = vunpack.c.h.b16 %v260
    %v924 = vunpack.c.l.b16 %v261
    %v925 = vunpack.c.h.b16 %v261
    %v926 = vunpack.c.l.b16 %v262
    %v927 = vunpack.c.h.b16 %v262
    %v928 = vunpack.c.l.b16 %v263
    %v929 = vunpack.c.h.b16 %v263
    %v930 = vunpack.c.l.b16 %v264
    %v931 = vunpack.c.h.b16 %v264
    %v932 = vunpack.c.l.b16 %v265
    %v933 = vunpack.c.h.b16 %v265
    %v934 = vunpack.c.l.b16 %v266
    %v935 = vunpack.c.h.b16 %v266
    %v936 = vunpack.c.l.b16 %v267
    %v937 = vunpack.c.h.b16 %v267
    %v938 = vunpack.c.l.b16 %v268
    %v939 = vunpack.c.h.b16 %v268
    %v940 = vunpack.c.l.b16 %v269
    %v941 = vunpack.c.h.b16 %v269
    %v942 = vunpack.c.l.b16 %v270
    %v943 = vunpack.c.h.b16 %v270
    %v944 = vunpack.c.l.b16 %v271
    %v945 = vunpack.c.h.b16 %v271
    %v946 = vunpack.c.l.b16 %v272
    %v947 = vunpack.c.h.b16 %v272
    %v948 = vunpack.c.l.b16 %v273
    %v949 = vunpack.c.h.b16 %v273
    %v950 = vunpack.c.l.b16 %v274
    %v951 = vunpack.c.h.b16 %v274
    %v952 = vunpack.c.l.b16 %v275
    %v953 = vunpack.c.h.b16 %v275
    %v954 = vunpack.c.l.b16 %v276
    %v955 = vunpack.c.h.b16 %v276
    %v956 = vunpack.c.l.b16 %v277
    %v957 = vunpack.c.h.b16 %v277
    %v958 = vunpack.c.l.b16 %v278
    %v959 = vunpack.c.h.b16 %v278
    %v960 = vunpack.c.l.b16 %v279
    %v961 = vunpack.c.h.b16 %v279
    %v962 = vunpack.c.l.b16 %v280
    %v963 = vunpack.c.h.b16 %v280
    %v964 = vunpack.c.l.b16 %v281
    %v965 = vunpack.c.h.b16 %v281
    %v966 = vunpack.c.l.b16 %v282
    %v967 = vunpack.c.h.b16 %v282
    %v968 = vunpack.c.l.b16 %v283
    %v969 = vunpack.c.h.b16 %v283
    %v970 = vunpack.c.l.b16 %v284
    %v971 = vunpack.c.h.b16 %v284
    %v972 = vunpack.c.l.b16 %v285
    %v973 = vunpack.c.h.b16 %v285
    %v974 = vunpack.c.l.b16 %v286
    %v975 = vunpack.c.h.b16 %v286
    %v976 = vunpack.c.l.b16 %v287
    %v977 = vunpack.c.h.b16 %v287
    %v978 = vunpack.c.l.b16 %v288
    %v979 = vunpack.c.h.b16 %v288
    %v980 = vunpack.c.l.b16 %v289
    %v981 = vunpack.c.h.b16 %v289
    %v982 = vunpack.c.l.b16 %v290
    %v983 = vunpack.c.h.b16 %v290
    %v984 = vunpack.c.l.b16 %v291
    %v985 = vunpack.c.h.b16 %v291
    %v986 = vunpack.c.l.b16 %v292
    %v987 = vunpack.c.h.b16 %v292
    %v988 = vunpack.c.l.b16 %v293
    %v989 = vunpack.c.h.b16 %v293
    %v990 = vunpack.c.l.b16 %v294
    %v991 = vunpack.c.h.b16 %v294
    %v992 = vunpack.c.l.b16 %v295
    %v993 = vunpack.c.h.b16 %v295
    %v994 = vunpack.c.l.b16 %v296
    %v995 = vunpack.c.h.b16 %v296
    %v996 = vunpack.c.l.b16 %v297
    %v997 = vunpack.c.h.b16 %v297
    %v998 = vunpack.c.l.b16 %v298
    %v999 = vunpack.c.h.b16 %v298
    %v1000 = vunpack.c.l.b16 %v299
    %v1001 = vunpack.c.h.b16 %v299
    %v1002 = vunpack.c.l.b16 %v300
    %v1003 = vunpack.c.h.b16 %v300
    %v1004 = vunpack.c.l.b16 %v301
    %v1005 = vunpack.c.h.b16 %v301
    %v1006 = vunpack.c.l.b16 %v302
    %v1007 = vunpack.c.h.b16 %v302
    %v1008 = vunpack.c.l.b16 %v303
    %v1009 = vunpack.c.h.b16 %v303
    %v1010 = vunpack.c.l.b16 %v304
    %v1011 = vunpack.c.h.b16 %v304
    %v1012 = vunpack.c.l.b16 %v305
    %v1013 = vunpack.c.h.b16 %v305
    %v1014 = vunpack.c.l.b16 %v306
    %v1015 = vunpack.c.h.b16 %v306
    %v1016 = vunpack.c.l.b16 %v307
    %v1017 = vunpack.c.h.b16 %v307
    %v1018 = vunpack.c.l.b16 %v308
    %v1019 = vunpack.c.h.b16 %v308
    %v1020 = vunpack.c.l.b16 %v309
    %v1021 = vunpack.c.h.b16 %v309
    %v1022 = vunpack.c.l.b16 %v310
    %v1023 = vunpack.c.h.b16 %v310
    %v1024 = vunpack.c.l.b16 %v311
    %v1025 = vunpack.c.h.b16 %v311
    %v1026 = vunpack.c.l.b16 %v312
    %v1027 = vunpack.c.h.b16 %v312
    %v1028 = vunpack.c.l.b16 %v313
    %v1029 = vunpack.c.h.b16 %v313
    %v1030 = vunpack.c.l.b16 %v314
    %v1031 = vunpack.c.h.b16 %v314
    %v1032 = vunpack.c.l.b16 %v315
    %v1033 = vunpack.c.h.b16 %v315
    %v1034 = vunpack.c.l.b16 %v316
    %v1035 = vunpack.c.h.b16 %v316
    %v1036 = vpack.c.b16 %v592, %v588
    %v1037 = vpack.c.b16 %v593, %v589
    %v1038 = vpack.c.b16 %v594, %v590
    %v1039 = vpack.c.b16 %v595, %v591
    %v1040 = vpack.c.b16 %v600, %v596
    %v1041 = vpack.c.b16 %v601, %v597
    %v1042 = vpack.c.b16 %v602, %v598
    %v1043 = vpack.c.b16 %v603, %v599
    %v1044 = vpack.c.b16 %v608, %v604
    %v1045 = vpack.c.b16 %v609, %v605
    %v1046 = vpack.c.b16 %v610, %v606
    %v1047 = vpack.c.b16 %v611, %v607
    %v1048 = vpack.c.b16 %v616, %v612
    %v1049 = vpack.c.b16 %v617, %v613
    %v1050 = vpack.c.b16 %v618, %v614
    %v1051 = vpack.c.b16 %v619, %v615
    %v1052 = vpack.c.b16 %v624, %v620
    %v1053 = vpack.c.b16 %v625, %v621
    %v1054 = vpack.c.b16 %v626, %v622
    %v1055 = vpack.c.b16 %v627, %v623
    %v1056 = vpack.c.b16 %v632, %v628
    %v1057 = vpack.c.b16 %v633, %v629
    %v1058 = vpack.c.b16 %v634, %v630
    %v1059 = vpack.c.b16 %v635, %v631
    %v1060 = vpack.c.b16 %v640, %v636
    %v1061 = vpack.c.b16 %v641, %v637
    %v1062 = vpack.c.b16 %v642, %v638
    %v1063 = vpack.c.b16 %v643, %v639
    %v1064 = vpack.c.b16 %v648, %v644
    %v1065 = vpack.c.b16 %v649, %v645
    %v1066 = vpack.c.b16 %v650, %v646
    %v1067 = vpack.c.b16 %v651, %v647
    %v1068 = vpack.c.b16 %v656, %v652
    %v1069 = vpack.c.b16 %v657, %v653
    %v1070 = vpack.c.b16 %v658, %v654
    %v1071 = vpack.c.b16 %v659, %v655
    %v1072 = vpack.c.b16 %v664, %v660
    %v1073 = vpack.c.b16 %v665, %v661
    %v1074 = vpack.c.b16 %v666, %v662
    %v1075 = vpack.c.b16 %v667, %v663
    %v1076 = vpack.c.b16 %v672, %v668
    %v1077 = vpack.c.b16 %v673, %v669
    %v1078 = vpack.c.b16 %v674, %v670
    %v1079 = vpack.c.b16 %v675, %v671
    %v1080 = vpack.c.b16 %v680, %v676
    %v1081 = vpack.c.b16 %v681, %v677
    %v1082 = vpack.c.b16 %v682, %v678
    %v1083 = vpack.c.b16 %v683, %v679
    %v1084 = vpack.c.b16 %v688, %v684
    %v1085 = vpack.c.b16 %v689, %v685
    %v1086 = vpack.c.b16 %v690, %v686
    %v1087 = vpack.c.b16 %v691, %v687
    %v1088 = vpack.c.b16 %v696, %v692
    %v1089 = vpack.c.b16 %v697, %v693
    %v1090 = vpack.c.b16 %v698, %v694
    %v1091 = vpack.c.b16 %v699, %v695
    %v1092 = vpack.c.b16 %v704, %v700
    %v1093 = vpack.c.b16 %v705, %v701
    %v1094 = vpack.c.b16 %v706, %v702
    %v1095 = vpack.c.b16 %v707, %v703
    %v1096 = vpack.c.b16 %v712, %v708
    %v1097 = vpack.c.b16 %v713, %v709
    %v1098 = vpack.c.b16 %v714, %v710
    %v1099 = vpack.c.b16 %v715, %v711
    %v1100 = vpack.c.b16 %v720, %v716
    %v1101 = vpack.c.b16 %v721, %v717
    %v1102 = vpack.c.b16 %v722, %v718
    %v1103 = vpack.c.b16 %v723, %v719
    %v1104 = vpack.c.b16 %v728, %v724
    %v1105 = vpack.c.b16 %v729, %v725
    %v1106 = vpack.c.b16 %v730, %v726
    %v1107 = vpack.c.b16 %v731, %v727
    %v1108 = vpack.c.b16 %v736, %v732
    %v1109 = vpack.c.b16 %v737, %v733
    %v1110 = vpack.c.b16 %v738, %v734
    %v1111 = vpack.c.b16 %v739, %v735
    %v1112 = vpack.c.b16 %v744, %v740
    %v1113 = vpack.c.b16 %v745, %v741
    %v1114 = vpack.c.b16 %v746, %v742
    %v1115 = vpack.c.b16 %v747, %v743
    %v1116 = vpack.c.b16 %v752, %v748
    %v1117 = vpack.c.b16 %v753, %v749
    %v1118 = vpack.c.b16 %v754, %v750
    %v1119 = vpack.c.b16 %v755, %v751
    %v1120 = vpack.c.b16 %v760, %v756
    %v1121 = vpack.c.b16 %v761, %v757
    %v1122 = vpack.c.b16 %v762, %v758
    %v1123 = vpack.c.b16 %v763, %v759
    %v1124 = vpack.c.b16 %v768, %v764
    %v1125 = vpack.c.b16 %v769, %v765
    %v1126 = vpack.c.b16 %v770, %v766
    %v1127 = vpack.c.b16 %v771, %v767
    %v1128 = vpack.c.b16 %v776, %v772
    %v1129 = vpack.c.b16 %v777, %v773
    %v1130 = vpack.c.b16 %v778, %v774
    %v1131 = vpack.c.b16 %v779, %v775
    %v1132 = vpack.c.b16 %v784, %v780
    %v1133 = vpack.c.b16 %v785, %v781
    %v1134 = vpack.c.b16 %v786, %v782
    %v1135 = vpack.c.b16 %v787, %v783
    %v1136 = vpack.c.b16 %v792, %v788
    %v1137 = vpack.c.b16 %v793, %v789
    %v1138 = vpack.c.b16 %v794, %v790
    %v1139 = vpack.c.b16 %v795, %v791
    %v1140 = vpack.c.b16 %v800, %v796
    %v1141 = vpack.c.b16 %v801, %v797
    %v1142 = vpack.c.b16 %v802, %v798
    %v1143 = vpack.c.b16 %v803, %v799
    %v1144 = vpack.c.b16 %v808, %v804
    %v1145 = vpack.c.b16 %v809, %v805
    %v1146 = vpack.c.b16 %v810, %v806
    %v1147 = vpack.c.b16 %v811, %v807
    %v1148 = vpack.c.b16 %v816, %v812
    %v1149 = vpack.c.b16 %v817, %v813
    %v1150 = vpack.c.b16 %v818, %v814
    %v1151 = vpack.c.b16 %v819, %v815
    %v1152 = vpack.c.b16 %v824, %v820
    %v1153 = vpack.c.b16 %v825, %v821
    %v1154 = vpack.c.b16 %v826, %v822
    %v1155 = vpack.c.b16 %v827, %v823
    %v1156 = vpack.c.b16 %v832, %v828
    %v1157 = vpack.c.b16 %v833, %v829
    %v1158 = vpack.c.b16 %v834, %v830
    %v1159 = vpack.c.b16 %v835, %v831
    %v1160 = vpack.c.b16 %v840, %v836
    %v1161 = vpack.c.b16 %v841, %v837
    %v1162 = vpack.c.b16 %v842, %v838
    %v1163 = vpack.c.b16 %v843, %v839
    %v1164 = vpack.c.b16 %v848, %v844
    %v1165 = vpack.c.b16 %v849, %v845
    %v1166 = vpack.c.b16 %v850, %v846
    %v1167 = vpack.c.b16 %v851, %v847
    %v1168 = vpack.c.b16 %v856, %v852
    %v1169 = vpack.c.b16 %v857, %v853
    %v1170 = vpack.c.b16 %v858, %v854
    %v1171 = vpack.c.b16 %v859, %v855
    %v1172 = vpack.c.b16 %v864, %v860
    %v1173 = vpack.c.b16 %v865, %v861
    %v1174 = vpack.c.b16 %v866, %v862
    %v1175 = vpack.c.b16 %v867, %v863
    %v1176 = vpack.c.b16 %v872, %v868
    %v1177 = vpack.c.b16 %v873, %v869
    %v1178 = vpack.c.b16 %v874, %v870
    %v1179 = vpack.c.b16 %v875, %v871
    %v1180 = vpack.c.b16 %v880, %v876
    %v1181 = vpack.c.b16 %v881, %v877
    %v1182 = vpack.c.b16 %v882, %v878
    %v1183 = vpack.c.b16 %v883, %v879
    %v1184 = vpack.c.b16 %v888, %v884
    %v1185 = vpack.c.b16 %v889, %v885
    %v1186 = vpack.c.b16 %v890, %v886
    %v1187 = vpack.c.b16 %v891, %v887
    %v1188 = vpack.c.b16 %v896, %v892
    %v1189 = vpack.c.b16 %v897, %v893
    %v1190 = vpack.c.b16 %v898, %v894
    %v1191 = vpack.c.b16 %v899, %v895
    %v1192 = vpack.c.b16 %v904, %v900
    %v1193 = vpack.c.b16 %v905, %v901
    %v1194 = vpack.c.b16 %v906, %v902
    %v1195 = vpack.c.b16 %v907, %v903
    %v1196 = vpack.c.b16 %v912, %v908
    %v1197 = vpack.c.b16 %v913, %v909
    %v1198 = vpack.c.b16 %v914, %v910
    %v1199 = vpack.c.b16 %v915, %v911
    %v1200 = vpack.c.b16 %v920, %v916
    %v1201 = vpack.c.b16 %v921, %v917
    %v1202 = vpack.c.b16 %v922, %v918
    %v1203 = vpack.c.b16 %v923, %v919
    %v1204 = vpack.c.b16 %v928, %v924
    %v1205 = vpack.c.b16 %v929, %v925
    %v1206 = vpack.c.b16 %v930, %v926
    %v1207 = vpack.c.b16 %v931, %v927
    %v1208 = vpack.c.b16 %v936, %v932
    %v1209 = vpack.c.b16 %v937, %v933
    %v1210 = vpack.c.b16 %v938, %v934
    %v1211 = vpack.c.b16 %v939, %v935
    %v1212 = vpack.c.b16 %v944, %v940
    %v1213 = vpack.c.b16 %v945, %v941
    %v1214 = vpack.c.b16 %v946, %v942
    %v1215 = vpack.c.b16 %v947, %v943
    %v1216 = vpack.c.b16 %v952, %v948
    %v1217 = vpack.c.b16 %v953, %v949
    %v1218 = vpack.c.b16 %v954, %v950
    %v1219 = vpack.c.b16 %v955, %v951
    %v1220 = vpack.c.b16 %v960, %v956
    %v1221 = vpack.c.b16 %v961, %v957
    %v1222 = vpack.c.b16 %v962, %v958
    %v1223 = vpack.c.b16 %v963, %v959
    %v1224 = vpack.c.b16 %v968, %v964
    %v1225 = vpack.c.b16 %v969, %v965
    %v1226 = vpack.c.b16 %v970, %v966
    %v1227 = vpack.c.b16 %v971, %v967
    %v1228 = vpack.c.b16 %v976, %v972
    %v1229 = vpack.c.b16 %v977, %v973
    %v1230 = vpack.c.b16 %v978, %v974
    %v1231 = vpack.c.b16 %v979, %v975
    %v1232 = vpack.c.b16 %v984, %v980
    %v1233 = vpack.c.b16 %v985, %v981
    %v1234 = vpack.c.b16 %v986, %v982
    %v1235 = vpack.c.b16 %v987, %v983
    %v1236 = vpack.c.b16 %v992, %v988
    %v1237 = vpack.c.b16 %v993, %v989
    %v1238 = vpack.c.b16 %v994, %v990
    %v1239 = vpack.c.b16 %v995, %v991
    %v1240 = vpack.c.b16 %v1000, %v996
    %v1241 = vpack.c.b16 %v1001, %v997
    %v1242 = vpack.c.b16 %v1002, %v998
    %v1243 = vpack.c.b16 %v1003, %v999
    %v1244 = vpack.c.b16 %v1008, %v1004
    %v1245 = vpack.c.b16 %v1009, %v1005
    %v1246 = vpack.c.b16 %v1010, %v1006
    %v1247 = vpack.c.b16 %v1011, %v1007
    %v1248 = vpack.c.b16 %v1016, %v1012
    %v1249 = vpack.c.b16 %v1017, %v1013
    %v1250 = vpack.c.b16 %v1018, %v1014
    %v1251 = vpack.c.b16 %v1019, %v1015
    %v1252 = vpack.c.b16 %v1024, %v1020
    %v1253 = vpack.c.b16 %v1025, %v1021
    %v1254 = vpack.c.b16 %v1026, %v1022
    %v1255 = vpack.c.b16 %v1027, %v1023
    %v1256 = vpack.c.b16 %v1032, %v1028
    %v1257 = vpack.c.b16 %v1033, %v1029
    %v1258 = vpack.c.b16 %v1034, %v1030
    %v1259 = vpack.c.b16 %v1035, %v1031
    %1484 = vmatprep.subr.bf16.mxu0 %v1065
    %1485 = vmatpush1.bf16.msra.mxu0 %v1064
    %1486 = vmatprep.subr.bf16.mxu0 %v1061
    %1487 = vmatpush1.bf16.msra.mxu0 %v1060
    %1488 = vmatprep.subr.bf16.mxu0 %v1057
    %1489 = vmatpush1.bf16.msra.mxu0 %v1056
    %1490 = vmatprep.subr.bf16.mxu0 %v1053
    %1491 = vmatpush1.bf16.msra.mxu0 %v1052
    %1492 = vmatprep.subr.bf16.mxu0 %v1049
    %1493 = vmatpush1.bf16.msra.mxu0 %v1048
    %1494 = vmatprep.subr.bf16.mxu0 %v1045
    %1495 = vmatpush1.bf16.msra.mxu0 %v1044
    %1496 = vmatprep.subr.bf16.mxu0 %v1041
    %1497 = vmatpush1.bf16.msra.mxu0 %v1040
    %1498 = vmatprep.subr.bf16.mxu0 %v1037
    %1499 = vmatpush1.bf16.msra.mxu0 %v1036
    %1500 = vmatprep.subr.bf16.mxu0 %v1097
    %1501 = vmatpush2.bf16.msra.mxu0 %v1096
    %1502 = vmatprep.subr.bf16.mxu0 %v1093
    %1503 = vmatpush2.bf16.msra.mxu0 %v1092
    %1504 = vmatprep.subr.bf16.mxu0 %v1089
    %1505 = vmatpush2.bf16.msra.mxu0 %v1088
    %1506 = vmatprep.subr.bf16.mxu0 %v1085
    %1507 = vmatpush2.bf16.msra.mxu0 %v1084
    %1508 = vmatprep.subr.bf16.mxu0 %v1081
    %1509 = vmatpush2.bf16.msra.mxu0 %v1080
    %1510 = vmatprep.subr.bf16.mxu0 %v1077
    %1511 = vmatpush2.bf16.msra.mxu0 %v1076
    %1512 = vmatprep.subr.bf16.mxu0 %v1073
    %1513 = vmatpush2.bf16.msra.mxu0 %v1072
    %1514 = vmatprep.subr.bf16.mxu0 %v1069
    %1515 = vmatpush2.bf16.msra.mxu0 %v1068
    %1516 = vmatprep.mubr.bf16.mxu0 %v351
    %1517 = vmatmul.mubr.bf16.gmra.mxu0 %v350
    %v1518 = vpop.f32.mrf.mxu0
    %v1519 = vadd.f32 %v322, %v1518
    %v1520 = vpop.f32.mrf.mxu0
    %v1521 = vadd.f32 %v326, %v1520
    %v1522 = vpop.f32.mrf.mxu0
    %v1523 = vpop.f32.mrf.mxu0
    %1524 = vdwg.mxu0
    %1525 = vmatprep.subr.bf16.mxu0 %v1129
    %1526 = vmatpush1.bf16.msra.mxu0 %v1128
    %1527 = vmatprep.subr.bf16.mxu0 %v1125
    %1528 = vmatpush1.bf16.msra.mxu0 %v1124
    %1529 = vmatprep.subr.bf16.mxu0 %v1121
    %1530 = vmatpush1.bf16.msra.mxu0 %v1120
    %1531 = vmatprep.subr.bf16.mxu0 %v1117
    %1532 = vmatpush1.bf16.msra.mxu0 %v1116
    %1533 = vmatprep.subr.bf16.mxu0 %v1113
    %1534 = vmatpush1.bf16.msra.mxu0 %v1112
    %1535 = vmatprep.subr.bf16.mxu0 %v1109
    %1536 = vmatpush1.bf16.msra.mxu0 %v1108
    %1537 = vmatprep.subr.bf16.mxu0 %v1105
    %1538 = vmatpush1.bf16.msra.mxu0 %v1104
    %1539 = vmatprep.subr.bf16.mxu0 %v1101
    %1540 = vmatpush1.bf16.msra.mxu0 %v1100
    %1541 = vmatprep.subr.bf16.mxu0 %v1161
    %1542 = vmatpush2.bf16.msra.mxu0 %v1160
    %1543 = vmatprep.subr.bf16.mxu0 %v1157
    %1544 = vmatpush2.bf16.msra.mxu0 %v1156
    %1545 = vmatprep.subr.bf16.mxu0 %v1153
    %1546 = vmatpush2.bf16.msra.mxu0 %v1152
    %1547 = vmatprep.subr.bf16.mxu0 %v1149
    %1548 = vmatpush2.bf16.msra.mxu0 %v1148
    %1549 = vmatprep.subr.bf16.mxu0 %v1145
    %1550 = vmatpush2.bf16.msra.mxu0 %v1144
    %1551 = vmatprep.subr.bf16.mxu0 %v1141
    %1552 = vmatpush2.bf16.msra.mxu0 %v1140
    %1553 = vmatprep.subr.bf16.mxu0 %v1137
    %1554 = vmatpush2.bf16.msra.mxu0 %v1136
    %1555 = vmatprep.subr.bf16.mxu0 %v1133
    %1556 = vmatpush2.bf16.msra.mxu0 %v1132
    %1557 = vmatprep.mubr.bf16.mxu0 %v353
    %1558 = vmatmul.mubr.bf16.gmra.mxu0 %v352
    %v1559 = vpop.f32.mrf.mxu0
    %v1560 = vadd.f32 %v1519, %v1559
    %v1561 = vpop.f32.mrf.mxu0
    %v1562 = vadd.f32 %v1521, %v1561
    %v1563 = vpop.f32.mrf.mxu0
    %v1564 = vpop.f32.mrf.mxu0
    %1565 = vdwg.mxu0
    %1566 = vmatprep.subr.bf16.mxu0 %v1193
    %1567 = vmatpush1.bf16.msra.mxu0 %v1192
    %1568 = vmatprep.subr.bf16.mxu0 %v1189
    %1569 = vmatpush1.bf16.msra.mxu0 %v1188
    %1570 = vmatprep.subr.bf16.mxu0 %v1185
    %1571 = vmatpush1.bf16.msra.mxu0 %v1184
    %1572 = vmatprep.subr.bf16.mxu0 %v1181
    %1573 = vmatpush1.bf16.msra.mxu0 %v1180
    %1574 = vmatprep.subr.bf16.mxu0 %v1177
    %1575 = vmatpush1.bf16.msra.mxu0 %v1176
    %1576 = vmatprep.subr.bf16.mxu0 %v1173
    %1577 = vmatpush1.bf16.msra.mxu0 %v1172
    %1578 = vmatprep.subr.bf16.mxu0 %v1169
    %1579 = vmatpush1.bf16.msra.mxu0 %v1168
    %1580 = vmatprep.subr.bf16.mxu0 %v1165
    %1581 = vmatpush1.bf16.msra.mxu0 %v1164
    %1582 = vmatprep.subr.bf16.mxu0 %v1225
    %1583 = vmatpush2.bf16.msra.mxu0 %v1224
    %1584 = vmatprep.subr.bf16.mxu0 %v1221
    %1585 = vmatpush2.bf16.msra.mxu0 %v1220
    %1586 = vmatprep.subr.bf16.mxu0 %v1217
    %1587 = vmatpush2.bf16.msra.mxu0 %v1216
    %1588 = vmatprep.subr.bf16.mxu0 %v1213
    %1589 = vmatpush2.bf16.msra.mxu0 %v1212
    %1590 = vmatprep.subr.bf16.mxu0 %v1209
    %1591 = vmatpush2.bf16.msra.mxu0 %v1208
    %1592 = vmatprep.subr.bf16.mxu0 %v1205
    %1593 = vmatpush2.bf16.msra.mxu0 %v1204
    %1594 = vmatprep.subr.bf16.mxu0 %v1201
    %1595 = vmatpush2.bf16.msra.mxu0 %v1200
    %1596 = vmatprep.subr.bf16.mxu0 %v1197
    %1597 = vmatpush2.bf16.msra.mxu0 %v1196
    %1598 = vmatprep.mubr.bf16.mxu0 %v355
    %1599 = vmatmul.mubr.bf16.gmra.mxu0 %v354
    %v1600 = vpop.f32.mrf.mxu0
    %v1601 = vadd.f32 %v1560, %v1600
    %v1602 = vpop.f32.mrf.mxu0
    %v1603 = vadd.f32 %v1562, %v1602
    %v1604 = vpop.f32.mrf.mxu0
    %v1605 = vpop.f32.mrf.mxu0
    %1606 = vdwg.mxu0
    %1607 = vmatprep.subr.bf16.mxu0 %v1257
    %1608 = vmatpush1.bf16.msra.mxu0 %v1256
    %1609 = vmatprep.subr.bf16.mxu0 %v1253
    %1610 = vmatpush1.bf16.msra.mxu0 %v1252
    %1611 = vmatprep.subr.bf16.mxu0 %v1249
    %1612 = vmatpush1.bf16.msra.mxu0 %v1248
    %1613 = vmatprep.subr.bf16.mxu0 %v1245
    %1614 = vmatpush1.bf16.msra.mxu0 %v1244
    %1615 = vmatprep.subr.bf16.mxu0 %v1241
    %1616 = vmatpush1.bf16.msra.mxu0 %v1240
    %1617 = vmatprep.subr.bf16.mxu0 %v1237
    %1618 = vmatpush1.bf16.msra.mxu0 %v1236
    %1619 = vmatprep.subr.bf16.mxu0 %v1233
    %1620 = vmatpush1.bf16.msra.mxu0 %v1232
    %1621 = vmatprep.subr.bf16.mxu0 %v1229
    %1622 = vmatpush1.bf16.msra.mxu0 %v1228
    %1623 = vmatprep.subr.bf16.mxu0 0
    %1624 = vmatpush2.bf16.msra.mxu0 0
    %1625 = vmatprep.subr.bf16.mxu0 0
    %1626 = vmatpush2.bf16.msra.mxu0 0
    %1627 = vmatprep.subr.bf16.mxu0 0
    %1628 = vmatpush2.bf16.msra.mxu0 0
    %1629 = vmatprep.subr.bf16.mxu0 0
    %1630 = vmatpush2.bf16.msra.mxu0 0
    %1631 = vmatprep.subr.bf16.mxu0 0
    %1632 = vmatpush2.bf16.msra.mxu0 0
    %1633 = vmatprep.subr.bf16.mxu0 0
    %1634 = vmatpush2.bf16.msra.mxu0 0
    %1635 = vmatprep.subr.bf16.mxu0 0
    %1636 = vmatpush2.bf16.msra.mxu0 0
    %1637 = vmatprep.subr.bf16.mxu0 0
    %1638 = vmatpush2.bf16.msra.mxu0 0
    %1639 = vmatprep.mubr.bf16.mxu0 0
    %1640 = vmatmul.mubr.bf16.gmra.mxu0 %v356
    %v1641 = vpop.f32.mrf.mxu0
    %v1642 = vadd.f32 %v1601, %v1641
    %v1643 = vpop.f32.mrf.mxu0
    %v1644 = vadd.f32 %v1603, %v1643
    %v1645 = vpop.f32.mrf.mxu0
    %v1646 = vpop.f32.mrf.mxu0
    %1647 = vdwg.mxu0
    %1648 = vmatprep.subr.bf16.mxu0 %v1067
    %1649 = vmatpush1.bf16.msra.mxu0 %v1066
    %1650 = vmatprep.subr.bf16.mxu0 %v1063
    %1651 = vmatpush1.bf16.msra.mxu0 %v1062
    %1652 = vmatprep.subr.bf16.mxu0 %v1059
    %1653 = vmatpush1.bf16.msra.mxu0 %v1058
    %1654 = vmatprep.subr.bf16.mxu0 %v1055
    %1655 = vmatpush1.bf16.msra.mxu0 %v1054
    %1656 = vmatprep.subr.bf16.mxu0 %v1051
    %1657 = vmatpush1.bf16.msra.mxu0 %v1050
    %1658 = vmatprep.subr.bf16.mxu0 %v1047
    %1659 = vmatpush1.bf16.msra.mxu0 %v1046
    %1660 = vmatprep.subr.bf16.mxu0 %v1043
    %1661 = vmatpush1.bf16.msra.mxu0 %v1042
    %1662 = vmatprep.subr.bf16.mxu0 %v1039
    %1663 = vmatpush1.bf16.msra.mxu0 %v1038
    %1664 = vmatprep.subr.bf16.mxu0 %v1099
    %1665 = vmatpush2.bf16.msra.mxu0 %v1098
    %1666 = vmatprep.subr.bf16.mxu0 %v1095
    %1667 = vmatpush2.bf16.msra.mxu0 %v1094
    %1668 = vmatprep.subr.bf16.mxu0 %v1091
    %1669 = vmatpush2.bf16.msra.mxu0 %v1090
    %1670 = vmatprep.subr.bf16.mxu0 %v1087
    %1671 = vmatpush2.bf16.msra.mxu0 %v1086
    %1672 = vmatprep.subr.bf16.mxu0 %v1083
    %1673 = vmatpush2.bf16.msra.mxu0 %v1082
    %1674 = vmatprep.subr.bf16.mxu0 %v1079
    %1675 = vmatpush2.bf16.msra.mxu0 %v1078
    %1676 = vmatprep.subr.bf16.mxu0 %v1075
    %1677 = vmatpush2.bf16.msra.mxu0 %v1074
    %1678 = vmatprep.subr.bf16.mxu0 %v1071
    %1679 = vmatpush2.bf16.msra.mxu0 %v1070
    %1680 = vmatprep.mubr.bf16.mxu0 %v351
    %1681 = vmatmul.mubr.bf16.gmra.mxu0 %v350
    %v1682 = vpop.f32.mrf.mxu0
    %v1683 = vadd.f32 %v330, %v1682
    %v1684 = vpop.f32.mrf.mxu0
    %v1685 = vadd.f32 %v334, %v1684
    %v1686 = vpop.f32.mrf.mxu0
    %v1687 = vpop.f32.mrf.mxu0
    %1688 = vdwg.mxu0
    %1689 = vmatprep.subr.bf16.mxu0 %v1131
    %1690 = vmatpush1.bf16.msra.mxu0 %v1130
    %1691 = vmatprep.subr.bf16.mxu0 %v1127
    %1692 = vmatpush1.bf16.msra.mxu0 %v1126
    %1693 = vmatprep.subr.bf16.mxu0 %v1123
    %1694 = vmatpush1.bf16.msra.mxu0 %v1122
    %1695 = vmatprep.subr.bf16.mxu0 %v1119
    %1696 = vmatpush1.bf16.msra.mxu0 %v1118
    %1697 = vmatprep.subr.bf16.mxu0 %v1115
    %1698 = vmatpush1.bf16.msra.mxu0 %v1114
    %1699 = vmatprep.subr.bf16.mxu0 %v1111
    %1700 = vmatpush1.bf16.msra.mxu0 %v1110
    %1701 = vmatprep.subr.bf16.mxu0 %v1107
    %1702 = vmatpush1.bf16.msra.mxu0 %v1106
    %1703 = vmatprep.subr.bf16.mxu0 %v1103
    %1704 = vmatpush1.bf16.msra.mxu0 %v1102
    %1705 = vmatprep.subr.bf16.mxu0 %v1163
    %1706 = vmatpush2.bf16.msra.mxu0 %v1162
    %1707 = vmatprep.subr.bf16.mxu0 %v1159
    %1708 = vmatpush2.bf16.msra.mxu0 %v1158
    %1709 = vmatprep.subr.bf16.mxu0 %v1155
    %1710 = vmatpush2.bf16.msra.mxu0 %v1154
    %1711 = vmatprep.subr.bf16.mxu0 %v1151
    %1712 = vmatpush2.bf16.msra.mxu0 %v1150
    %1713 = vmatprep.subr.bf16.mxu0 %v1147
    %1714 = vmatpush2.bf16.msra.mxu0 %v1146
    %1715 = vmatprep.subr.bf16.mxu0 %v1143
    %1716 = vmatpush2.bf16.msra.mxu0 %v1142
    %1717 = vmatprep.subr.bf16.mxu0 %v1139
    %1718 = vmatpush2.bf16.msra.mxu0 %v1138
    %1719 = vmatprep.subr.bf16.mxu0 %v1135
    %1720 = vmatpush2.bf16.msra.mxu0 %v1134
    %1721 = vmatprep.mubr.bf16.mxu0 %v353
    %1722 = vmatmul.mubr.bf16.gmra.mxu0 %v352
    %v1723 = vpop.f32.mrf.mxu0
    %v1724 = vadd.f32 %v1683, %v1723
    %v1725 = vpop.f32.mrf.mxu0
    %v1726 = vadd.f32 %v1685, %v1725
    %v1727 = vpop.f32.mrf.mxu0
    %v1728 = vpop.f32.mrf.mxu0
    %1729 = vdwg.mxu0
    %1730 = vmatprep.subr.bf16.mxu0 %v1195
    %1731 = vmatpush1.bf16.msra.mxu0 %v1194
    %1732 = vmatprep.subr.bf16.mxu0 %v1191
    %1733 = vmatpush1.bf16.msra.mxu0 %v1190
    %1734 = vmatprep.subr.bf16.mxu0 %v1187
    %1735 = vmatpush1.bf16.msra.mxu0 %v1186
    %1736 = vmatprep.subr.bf16.mxu0 %v1183
    %1737 = vmatpush1.bf16.msra.mxu0 %v1182
    %1738 = vmatprep.subr.bf16.mxu0 %v1179
    %1739 = vmatpush1.bf16.msra.mxu0 %v1178
    %1740 = vmatprep.subr.bf16.mxu0 %v1175
    %1741 = vmatpush1.bf16.msra.mxu0 %v1174
    %1742 = vmatprep.subr.bf16.mxu0 %v1171
    %1743 = vmatpush1.bf16.msra.mxu0 %v1170
    %1744 = vmatprep.subr.bf16.mxu0 %v1167
    %1745 = vmatpush1.bf16.msra.mxu0 %v1166
    %1746 = vmatprep.subr.bf16.mxu0 %v1227
    %1747 = vmatpush2.bf16.msra.mxu0 %v1226
    %1748 = vmatprep.subr.bf16.mxu0 %v1223
    %1749 = vmatpush2.bf16.msra.mxu0 %v1222
    %1750 = vmatprep.subr.bf16.mxu0 %v1219
    %1751 = vmatpush2.bf16.msra.mxu0 %v1218
    %1752 = vmatprep.subr.bf16.mxu0 %v1215
    %1753 = vmatpush2.bf16.msra.mxu0 %v1214
    %1754 = vmatprep.subr.bf16.mxu0 %v1211
    %1755 = vmatpush2.bf16.msra.mxu0 %v1210
    %1756 = vmatprep.subr.bf16.mxu0 %v1207
    %1757 = vmatpush2.bf16.msra.mxu0 %v1206
    %1758 = vmatprep.subr.bf16.mxu0 %v1203
    %1759 = vmatpush2.bf16.msra.mxu0 %v1202
    %1760 = vmatprep.subr.bf16.mxu0 %v1199
    %1761 = vmatpush2.bf16.msra.mxu0 %v1198
    %1762 = vmatprep.mubr.bf16.mxu0 %v355
    %1763 = vmatmul.mubr.bf16.gmra.mxu0 %v354
    %v1764 = vpop.f32.mrf.mxu0
    %v1765 = vadd.f32 %v1724, %v1764
    %v1766 = vpop.f32.mrf.mxu0
    %v1767 = vadd.f32 %v1726, %v1766
    %v1768 = vpop.f32.mrf.mxu0
    %v1769 = vpop.f32.mrf.mxu0
    %1770 = vdwg.mxu0
    %1771 = vmatprep.subr.bf16.mxu0 %v1259
    %1772 = vmatpush1.bf16.msra.mxu0 %v1258
    %1773 = vmatprep.subr.bf16.mxu0 %v1255
    %1774 = vmatpush1.bf16.msra.mxu0 %v1254
    %1775 = vmatprep.subr.bf16.mxu0 %v1251
    %1776 = vmatpush1.bf16.msra.mxu0 %v1250
    %1777 = vmatprep.subr.bf16.mxu0 %v1247
    %1778 = vmatpush1.bf16.msra.mxu0 %v1246
    %1779 = vmatprep.subr.bf16.mxu0 %v1243
    %1780 = vmatpush1.bf16.msra.mxu0 %v1242
    %1781 = vmatprep.subr.bf16.mxu0 %v1239
    %1782 = vmatpush1.bf16.msra.mxu0 %v1238
    %1783 = vmatprep.subr.bf16.mxu0 %v1235
    %1784 = vmatpush1.bf16.msra.mxu0 %v1234
    %1785 = vmatprep.subr.bf16.mxu0 %v1231
    %1786 = vmatpush1.bf16.msra.mxu0 %v1230
    %1787 = vmatprep.subr.bf16.mxu0 0
    %1788 = vmatpush2.bf16.msra.mxu0 0
    %1789 = vmatprep.subr.bf16.mxu0 0
    %1790 = vmatpush2.bf16.msra.mxu0 0
    %1791 = vmatprep.subr.bf16.mxu0 0
    %1792 = vmatpush2.bf16.msra.mxu0 0
    %1793 = vmatprep.subr.bf16.mxu0 0
    %1794 = vmatpush2.bf16.msra.mxu0 0
    %1795 = vmatprep.subr.bf16.mxu0 0
    %1796 = vmatpush2.bf16.msra.mxu0 0
    %1797 = vmatprep.subr.bf16.mxu0 0
    %1798 = vmatpush2.bf16.msra.mxu0 0
    %1799 = vmatprep.subr.bf16.mxu0 0
    %1800 = vmatpush2.bf16.msra.mxu0 0
    %1801 = vmatprep.subr.bf16.mxu0 0
    %1802 = vmatpush2.bf16.msra.mxu0 0
    %1803 = vmatprep.mubr.bf16.mxu0 0
    %1804 = vmatmul.mubr.bf16.gmra.mxu0 %v356
    %v1805 = vpop.f32.mrf.mxu0
    %v1806 = vadd.f32 %v1765, %v1805
    %v1807 = vpop.f32.mrf.mxu0
    %v1808 = vadd.f32 %v1767, %v1807
    %v1809 = vpop.f32.mrf.mxu0
    %v1810 = vpop.f32.mrf.mxu0
    %1811 = vdwg.mxu0
    %vm1812 = vcmp.gt.f32.partialorder %v1642, 0.0
    %vm1813 = vcmp.gt.f32.partialorder %v1644, 0.0
    %vm1814 = vcmp.gt.f32.partialorder %v1806, 0.0
    %vm1815 = vcmp.gt.f32.partialorder %v1808, 0.0
    %v1816 = vmul.f32 %v1642, 0.2
    %v1817 = vmul.f32 %v1644, 0.2
    %v1818 = vmul.f32 %v1806, 0.2
    %v1819 = vmul.f32 %v1808, 0.2
    %v1820 = vsel %vm1812, %v1642, %v1816
    %v1821 = vsel %vm1813, %v1644, %v1817
    %v1822 = vsel %vm1814, %v1806, %v1818
    %v1823 = vsel %vm1815, %v1808, %v1819
    %v1824 = vpack.c.bf16 %v1820, %v1820
    %v1825 = vpack.c.bf16 %v1821, %v1821
    %v1826 = vpack.c.bf16 %v1822, %v1822
    %v1827 = vpack.c.bf16 %v1823, %v1823
    %v1828 = vld [vmem:[#allocation8] sm:$0xff]
    %v1829 = vld [vmem:[#allocation8 + $0x8] sm:$0xff]
    %v1830 = vld [vmem:[#allocation8 + $0x10] sm:$0xff]
    %v1831 = vld [vmem:[#allocation8 + $0x18] sm:$0xff]
    %v1832 = vld [vmem:[#allocation8 + $0x20] sm:$0xff]
    %v1833 = vld [vmem:[#allocation8 + $0x28] sm:$0xff]
    %v1834 = vld [vmem:[#allocation8 + $0x30] sm:$0xff]
    %v1835 = vld [vmem:[#allocation8 + $0x38] sm:$0xff]
    %v1836 = vld [vmem:[#allocation8 + $0x40] sm:$0xff]
    %v1837 = vld [vmem:[#allocation8 + $0x48] sm:$0xff]
    %v1838 = vld [vmem:[#allocation8 + $0x50] sm:$0xff]
    %v1839 = vld [vmem:[#allocation8 + $0x58] sm:$0xff]
    %v1840 = vld [vmem:[#allocation8 + $0x60] sm:$0xff]
    %v1841 = vld [vmem:[#allocation8 + $0x68] sm:$0xff]
    %v1842 = vld [vmem:[#allocation8 + $0x70] sm:$0xff]
    %v1843 = vld [vmem:[#allocation8 + $0x78] sm:$0xff]
    %v1844 = vld [vmem:[#allocation8 + $0x80] sm:$0xff]
    %v1845 = vld [vmem:[#allocation8 + $0x88] sm:$0xff]
    %v1846 = vld [vmem:[#allocation8 + $0x90] sm:$0xff]
    %v1847 = vld [vmem:[#allocation8 + $0x98] sm:$0xff]
    %v1848 = vld [vmem:[#allocation8 + $0xa0] sm:$0xff]
    %v1849 = vld [vmem:[#allocation8 + $0xa8] sm:$0xff]
    %v1850 = vld [vmem:[#allocation8 + $0xb0] sm:$0xff]
    %v1851 = vld [vmem:[#allocation8 + $0xb8] sm:$0xff]
    %v1852 = vld [vmem:[#allocation8 + $0xc0] sm:$0xff]
    %v1853 = vld [vmem:[#allocation8 + $0xc8] sm:$0xff]
    %v1854 = vld [vmem:[#allocation8 + $0xd0] sm:$0xff]
    %v1855 = vld [vmem:[#allocation8 + $0xd8] sm:$0xff]
    %v1856 = vld [vmem:[#allocation8 + $0xe0] sm:$0xff]
    %v1857 = vld [vmem:[#allocation8 + $0xe8] sm:$0xff]
    %v1858 = vld [vmem:[#allocation8 + $0xf0] sm:$0xff]
    %v1859 = vld [vmem:[#allocation8 + $0xf8] sm:$0xff]
    %v1860 = vld [vmem:[#allocation8 + $0x100] sm:$0xff]
    %v1861 = vld [vmem:[#allocation8 + $0x108] sm:$0xff]
    %v1862 = vld [vmem:[#allocation8 + $0x110] sm:$0xff]
    %v1863 = vld [vmem:[#allocation8 + $0x118] sm:$0xff]
    %v1864 = vld [vmem:[#allocation8 + $0x120] sm:$0xff]
    %v1865 = vld [vmem:[#allocation8 + $0x128] sm:$0xff]
    %v1866 = vld [vmem:[#allocation8 + $0x130] sm:$0xff]
    %v1867 = vld [vmem:[#allocation8 + $0x138] sm:$0xff]
    %v1868 = vld [vmem:[#allocation8 + $0x140] sm:$0xff]
    %v1869 = vld [vmem:[#allocation8 + $0x148] sm:$0xff]
    %v1870 = vld [vmem:[#allocation8 + $0x150] sm:$0xff]
    %v1871 = vld [vmem:[#allocation8 + $0x158] sm:$0xff]
    %v1872 = vld [vmem:[#allocation8 + $0x160] sm:$0xff]
    %v1873 = vld [vmem:[#allocation8 + $0x168] sm:$0xff]
    %v1874 = vld [vmem:[#allocation8 + $0x170] sm:$0xff]
    %v1875 = vld [vmem:[#allocation8 + $0x178] sm:$0xff]
    %v1876 = vld [vmem:[#allocation8 + $0x180] sm:$0xff]
    %v1877 = vld [vmem:[#allocation8 + $0x188] sm:$0xff]
    %v1878 = vld [vmem:[#allocation8 + $0x190] sm:$0xff]
    %v1879 = vld [vmem:[#allocation8 + $0x198] sm:$0xff]
    %v1880 = vld [vmem:[#allocation8 + $0x1a0] sm:$0xff]
    %v1881 = vld [vmem:[#allocation8 + $0x1a8] sm:$0xff]
    %v1882 = vld [vmem:[#allocation8 + $0x1b0] sm:$0xff]
    %v1883 = vld [vmem:[#allocation8 + $0x1b8] sm:$0xff]
    %v1884 = vld [vmem:[#allocation8 + $0x1c0] sm:$0xff]
    %v1885 = vld [vmem:[#allocation8 + $0x1c8] sm:$0xff]
    %v1886 = vld [vmem:[#allocation8 + $0x1d0] sm:$0xff]
    %v1887 = vld [vmem:[#allocation8 + $0x1d8] sm:$0xff]
    %v1888 = vld [vmem:[#allocation8 + $0x1e0] sm:$0xff]
    %v1889 = vld [vmem:[#allocation8 + $0x1e8] sm:$0xff]
    %v1890 = vld [vmem:[#allocation8 + $0x1f0] sm:$0xff]
    %v1891 = vld [vmem:[#allocation8 + $0x1f8] sm:$0xff]
    %v1892 = vld [vmem:[%s4] sm:$0x3]
    %v1894 = vlaneseq
    %v1895 = vshrl.u32 %v1894, 7
    %v1896 = vsub.s32 0, %v1895
    %v1897 = vrot.slane %v1892, %v1896
    %v1898 = vlaneseq
    %v1899 = vshrl.u32 %v1898, 7
    %v1900 = vsub.s32 1, %v1899
    %v1901 = vrot.slane %v1892, %v1900
    %v1968 = vunpack.c.l.b16 %v1828
    %v1969 = vunpack.c.h.b16 %v1828
    %v1970 = vunpack.c.l.b16 %v1829
    %v1971 = vunpack.c.h.b16 %v1829
    %v1972 = vunpack.c.l.b16 %v1830
    %v1973 = vunpack.c.h.b16 %v1830
    %v1974 = vunpack.c.l.b16 %v1831
    %v1975 = vunpack.c.h.b16 %v1831
    %v1976 = vunpack.c.l.b16 %v1832
    %v1977 = vunpack.c.h.b16 %v1832
    %v1978 = vunpack.c.l.b16 %v1833
    %v1979 = vunpack.c.h.b16 %v1833
    %v1980 = vunpack.c.l.b16 %v1834
    %v1981 = vunpack.c.h.b16 %v1834
    %v1982 = vunpack.c.l.b16 %v1835
    %v1983 = vunpack.c.h.b16 %v1835
    %v1984 = vunpack.c.l.b16 %v1836
    %v1985 = vunpack.c.h.b16 %v1836
    %v1986 = vunpack.c.l.b16 %v1837
    %v1987 = vunpack.c.h.b16 %v1837
    %v1988 = vunpack.c.l.b16 %v1838
    %v1989 = vunpack.c.h.b16 %v1838
    %v1990 = vunpack.c.l.b16 %v1839
    %v1991 = vunpack.c.h.b16 %v1839
    %v1992 = vunpack.c.l.b16 %v1840
    %v1993 = vunpack.c.h.b16 %v1840
    %v1994 = vunpack.c.l.b16 %v1841
    %v1995 = vunpack.c.h.b16 %v1841
    %v1996 = vunpack.c.l.b16 %v1842
    %v1997 = vunpack.c.h.b16 %v1842
    %v1998 = vunpack.c.l.b16 %v1843
    %v1999 = vunpack.c.h.b16 %v1843
    %v2000 = vunpack.c.l.b16 %v1844
    %v2001 = vunpack.c.h.b16 %v1844
    %v2002 = vunpack.c.l.b16 %v1845
    %v2003 = vunpack.c.h.b16 %v1845
    %v2004 = vunpack.c.l.b16 %v1846
    %v2005 = vunpack.c.h.b16 %v1846
    %v2006 = vunpack.c.l.b16 %v1847
    %v2007 = vunpack.c.h.b16 %v1847
    %v2008 = vunpack.c.l.b16 %v1848
    %v2009 = vunpack.c.h.b16 %v1848
    %v2010 = vunpack.c.l.b16 %v1849
    %v2011 = vunpack.c.h.b16 %v1849
    %v2012 = vunpack.c.l.b16 %v1850
    %v2013 = vunpack.c.h.b16 %v1850
    %v2014 = vunpack.c.l.b16 %v1851
    %v2015 = vunpack.c.h.b16 %v1851
    %v2016 = vunpack.c.l.b16 %v1852
    %v2017 = vunpack.c.h.b16 %v1852
    %v2018 = vunpack.c.l.b16 %v1853
    %v2019 = vunpack.c.h.b16 %v1853
    %v2020 = vunpack.c.l.b16 %v1854
    %v2021 = vunpack.c.h.b16 %v1854
    %v2022 = vunpack.c.l.b16 %v1855
    %v2023 = vunpack.c.h.b16 %v1855
    %v2024 = vunpack.c.l.b16 %v1856
    %v2025 = vunpack.c.h.b16 %v1856
    %v2026 = vunpack.c.l.b16 %v1857
    %v2027 = vunpack.c.h.b16 %v1857
    %v2028 = vunpack.c.l.b16 %v1858
    %v2029 = vunpack.c.h.b16 %v1858
    %v2030 = vunpack.c.l.b16 %v1859
    %v2031 = vunpack.c.h.b16 %v1859
    %v2032 = vunpack.c.l.b16 %v1860
    %v2033 = vunpack.c.h.b16 %v1860
    %v2034 = vunpack.c.l.b16 %v1861
    %v2035 = vunpack.c.h.b16 %v1861
    %v2036 = vunpack.c.l.b16 %v1862
    %v2037 = vunpack.c.h.b16 %v1862
    %v2038 = vunpack.c.l.b16 %v1863
    %v2039 = vunpack.c.h.b16 %v1863
    %v2040 = vunpack.c.l.b16 %v1864
    %v2041 = vunpack.c.h.b16 %v1864
    %v2042 = vunpack.c.l.b16 %v1865
    %v2043 = vunpack.c.h.b16 %v1865
    %v2044 = vunpack.c.l.b16 %v1866
    %v2045 = vunpack.c.h.b16 %v1866
    %v2046 = vunpack.c.l.b16 %v1867
    %v2047 = vunpack.c.h.b16 %v1867
    %v2048 = vunpack.c.l.b16 %v1868
    %v2049 = vunpack.c.h.b16 %v1868
    %v2050 = vunpack.c.l.b16 %v1869
    %v2051 = vunpack.c.h.b16 %v1869
    %v2052 = vunpack.c.l.b16 %v1870
    %v2053 = vunpack.c.h.b16 %v1870
    %v2054 = vunpack.c.l.b16 %v1871
    %v2055 = vunpack.c.h.b16 %v1871
    %v2056 = vunpack.c.l.b16 %v1872
    %v2057 = vunpack.c.h.b16 %v1872
    %v2058 = vunpack.c.l.b16 %v1873
    %v2059 = vunpack.c.h.b16 %v1873
    %v2060 = vunpack.c.l.b16 %v1874
    %v2061 = vunpack.c.h.b16 %v1874
    %v2062 = vunpack.c.l.b16 %v1875
    %v2063 = vunpack.c.h.b16 %v1875
    %v2064 = vunpack.c.l.b16 %v1876
    %v2065 = vunpack.c.h.b16 %v1876
    %v2066 = vunpack.c.l.b16 %v1877
    %v2067 = vunpack.c.h.b16 %v1877
    %v2068 = vunpack.c.l.b16 %v1878
    %v2069 = vunpack.c.h.b16 %v1878
    %v2070 = vunpack.c.l.b16 %v1879
    %v2071 = vunpack.c.h.b16 %v1879
    %v2072 = vunpack.c.l.b16 %v1880
    %v2073 = vunpack.c.h.b16 %v1880
    %v2074 = vunpack.c.l.b16 %v1881
    %v2075 = vunpack.c.h.b16 %v1881
    %v2076 = vunpack.c.l.b16 %v1882
    %v2077 = vunpack.c.h.b16 %v1882
    %v2078 = vunpack.c.l.b16 %v1883
    %v2079 = vunpack.c.h.b16 %v1883
    %v2080 = vunpack.c.l.b16 %v1884
    %v2081 = vunpack.c.h.b16 %v1884
    %v2082 = vunpack.c.l.b16 %v1885
    %v2083 = vunpack.c.h.b16 %v1885
    %v2084 = vunpack.c.l.b16 %v1886
    %v2085 = vunpack.c.h.b16 %v1886
    %v2086 = vunpack.c.l.b16 %v1887
    %v2087 = vunpack.c.h.b16 %v1887
    %v2088 = vunpack.c.l.b16 %v1888
    %v2089 = vunpack.c.h.b16 %v1888
    %v2090 = vunpack.c.l.b16 %v1889
    %v2091 = vunpack.c.h.b16 %v1889
    %v2092 = vunpack.c.l.b16 %v1890
    %v2093 = vunpack.c.h.b16 %v1890
    %v2094 = vunpack.c.l.b16 %v1891
    %v2095 = vunpack.c.h.b16 %v1891
    %v2096 = vpack.c.b16 %v1970, %v1968
    %v2097 = vpack.c.b16 %v1971, %v1969
    %v2098 = vpack.c.b16 %v1974, %v1972
    %v2099 = vpack.c.b16 %v1975, %v1973
    %v2100 = vpack.c.b16 %v1978, %v1976
    %v2101 = vpack.c.b16 %v1979, %v1977
    %v2102 = vpack.c.b16 %v1982, %v1980
    %v2103 = vpack.c.b16 %v1983, %v1981
    %v2104 = vpack.c.b16 %v1986, %v1984
    %v2105 = vpack.c.b16 %v1987, %v1985
    %v2106 = vpack.c.b16 %v1990, %v1988
    %v2107 = vpack.c.b16 %v1991, %v1989
    %v2108 = vpack.c.b16 %v1994, %v1992
    %v2109 = vpack.c.b16 %v1995, %v1993
    %v2110 = vpack.c.b16 %v1998, %v1996
    %v2111 = vpack.c.b16 %v1999, %v1997
    %v2112 = vpack.c.b16 %v2002, %v2000
    %v2113 = vpack.c.b16 %v2003, %v2001
    %v2114 = vpack.c.b16 %v2006, %v2004
    %v2115 = vpack.c.b16 %v2007, %v2005
    %v2116 = vpack.c.b16 %v2010, %v2008
    %v2117 = vpack.c.b16 %v2011, %v2009
    %v2118 = vpack.c.b16 %v2014, %v2012
    %v2119 = vpack.c.b16 %v2015, %v2013
    %v2120 = vpack.c.b16 %v2018, %v2016
    %v2121 = vpack.c.b16 %v2019, %v2017
    %v2122 = vpack.c.b16 %v2022, %v2020
    %v2123 = vpack.c.b16 %v2023, %v2021
    %v2124 = vpack.c.b16 %v2026, %v2024
    %v2125 = vpack.c.b16 %v2027, %v2025
    %v2126 = vpack.c.b16 %v2030, %v2028
    %v2127 = vpack.c.b16 %v2031, %v2029
    %v2128 = vpack.c.b16 %v2034, %v2032
    %v2129 = vpack.c.b16 %v2035, %v2033
    %v2130 = vpack.c.b16 %v2038, %v2036
    %v2131 = vpack.c.b16 %v2039, %v2037
    %v2132 = vpack.c.b16 %v2042, %v2040
    %v2133 = vpack.c.b16 %v2043, %v2041
    %v2134 = vpack.c.b16 %v2046, %v2044
    %v2135 = vpack.c.b16 %v2047, %v2045
    %v2136 = vpack.c.b16 %v2050, %v2048
    %v2137 = vpack.c.b16 %v2051, %v2049
    %v2138 = vpack.c.b16 %v2054, %v2052
    %v2139 = vpack.c.b16 %v2055, %v2053
    %v2140 = vpack.c.b16 %v2058, %v2056
    %v2141 = vpack.c.b16 %v2059, %v2057
    %v2142 = vpack.c.b16 %v2062, %v2060
    %v2143 = vpack.c.b16 %v2063, %v2061
    %v2144 = vpack.c.b16 %v2066, %v2064
    %v2145 = vpack.c.b16 %v2067, %v2065
    %v2146 = vpack.c.b16 %v2070, %v2068
    %v2147 = vpack.c.b16 %v2071, %v2069
    %v2148 = vpack.c.b16 %v2074, %v2072
    %v2149 = vpack.c.b16 %v2075, %v2073
    %v2150 = vpack.c.b16 %v2078, %v2076
    %v2151 = vpack.c.b16 %v2079, %v2077
    %v2152 = vpack.c.b16 %v2082, %v2080
    %v2153 = vpack.c.b16 %v2083, %v2081
    %v2154 = vpack.c.b16 %v2086, %v2084
    %v2155 = vpack.c.b16 %v2087, %v2085
    %v2156 = vpack.c.b16 %v2090, %v2088
    %v2157 = vpack.c.b16 %v2091, %v2089
    %v2158 = vpack.c.b16 %v2094, %v2092
    %v2159 = vpack.c.b16 %v2095, %v2093
    %2224 = vmatprep.subr.bf16.mxu0 %v2111
    %2225 = vmatpush1.bf16.msra.mxu0 %v2110
    %2226 = vmatprep.subr.bf16.mxu0 %v2109
    %2227 = vmatpush1.bf16.msra.mxu0 %v2108
    %2228 = vmatprep.subr.bf16.mxu0 %v2107
    %2229 = vmatpush1.bf16.msra.mxu0 %v2106
    %2230 = vmatprep.subr.bf16.mxu0 %v2105
    %2231 = vmatpush1.bf16.msra.mxu0 %v2104
    %2232 = vmatprep.subr.bf16.mxu0 %v2103
    %2233 = vmatpush1.bf16.msra.mxu0 %v2102
    %2234 = vmatprep.subr.bf16.mxu0 %v2101
    %2235 = vmatpush1.bf16.msra.mxu0 %v2100
    %2236 = vmatprep.subr.bf16.mxu0 %v2099
    %2237 = vmatpush1.bf16.msra.mxu0 %v2098
    %2238 = vmatprep.subr.bf16.mxu0 %v2097
    %2239 = vmatpush1.bf16.msra.mxu0 %v2096
    %2240 = vmatprep.subr.bf16.mxu0 %v2127
    %2241 = vmatpush2.bf16.msra.mxu0 %v2126
    %2242 = vmatprep.subr.bf16.mxu0 %v2125
    %2243 = vmatpush2.bf16.msra.mxu0 %v2124
    %2244 = vmatprep.subr.bf16.mxu0 %v2123
    %2245 = vmatpush2.bf16.msra.mxu0 %v2122
    %2246 = vmatprep.subr.bf16.mxu0 %v2121
    %2247 = vmatpush2.bf16.msra.mxu0 %v2120
    %2248 = vmatprep.subr.bf16.mxu0 %v2119
    %2249 = vmatpush2.bf16.msra.mxu0 %v2118
    %2250 = vmatprep.subr.bf16.mxu0 %v2117
    %2251 = vmatpush2.bf16.msra.mxu0 %v2116
    %2252 = vmatprep.subr.bf16.mxu0 %v2115
    %2253 = vmatpush2.bf16.msra.mxu0 %v2114
    %2254 = vmatprep.subr.bf16.mxu0 %v2113
    %2255 = vmatpush2.bf16.msra.mxu0 %v2112
    %2256 = vmatprep.mubr.bf16.mxu0 %v1825
    %2257 = vmatmul.mubr.bf16.gmra.mxu0 %v1824
    %v2258 = vpop.f32.mrf.mxu0
    %v2259 = vadd.f32 %v1897, %v2258
    %v2260 = vpop.f32.mrf.mxu0
    %v2261 = vadd.f32 %v1901, %v2260
    %v2262 = vpop.f32.mrf.mxu0
    %v2263 = vpop.f32.mrf.mxu0
    %2264 = vdwg.mxu0
    %2265 = vmatprep.subr.bf16.mxu0 %v2143
    %2266 = vmatpush1.bf16.msra.mxu0 %v2142
    %2267 = vmatprep.subr.bf16.mxu0 %v2141
    %2268 = vmatpush1.bf16.msra.mxu0 %v2140
    %2269 = vmatprep.subr.bf16.mxu0 %v2139
    %2270 = vmatpush1.bf16.msra.mxu0 %v2138
    %2271 = vmatprep.subr.bf16.mxu0 %v2137
    %2272 = vmatpush1.bf16.msra.mxu0 %v2136
    %2273 = vmatprep.subr.bf16.mxu0 %v2135
    %2274 = vmatpush1.bf16.msra.mxu0 %v2134
    %2275 = vmatprep.subr.bf16.mxu0 %v2133
    %2276 = vmatpush1.bf16.msra.mxu0 %v2132
    %2277 = vmatprep.subr.bf16.mxu0 %v2131
    %2278 = vmatpush1.bf16.msra.mxu0 %v2130
    %2279 = vmatprep.subr.bf16.mxu0 %v2129
    %2280 = vmatpush1.bf16.msra.mxu0 %v2128
    %2281 = vmatprep.subr.bf16.mxu0 %v2159
    %2282 = vmatpush2.bf16.msra.mxu0 %v2158
    %2283 = vmatprep.subr.bf16.mxu0 %v2157
    %2284 = vmatpush2.bf16.msra.mxu0 %v2156
    %2285 = vmatprep.subr.bf16.mxu0 %v2155
    %2286 = vmatpush2.bf16.msra.mxu0 %v2154
    %2287 = vmatprep.subr.bf16.mxu0 %v2153
    %2288 = vmatpush2.bf16.msra.mxu0 %v2152
    %2289 = vmatprep.subr.bf16.mxu0 %v2151
    %2290 = vmatpush2.bf16.msra.mxu0 %v2150
    %2291 = vmatprep.subr.bf16.mxu0 %v2149
    %2292 = vmatpush2.bf16.msra.mxu0 %v2148
    %2293 = vmatprep.subr.bf16.mxu0 %v2147
    %2294 = vmatpush2.bf16.msra.mxu0 %v2146
    %2295 = vmatprep.subr.bf16.mxu0 %v2145
    %2296 = vmatpush2.bf16.msra.mxu0 %v2144
    %2297 = vmatprep.mubr.bf16.mxu0 %v1827
    %2298 = vmatmul.mubr.bf16.gmra.mxu0 %v1826
    %v2299 = vpop.f32.mrf.mxu0
    %v2300 = vadd.f32 %v2259, %v2299
    %v2301 = vpop.f32.mrf.mxu0
    %v2302 = vadd.f32 %v2261, %v2301
    %v2303 = vpop.f32.mrf.mxu0
    %v2304 = vpop.f32.mrf.mxu0
    %2305 = vdwg.mxu0
    %vm2306 = vcmp.gt.f32.partialorder %v2300, 0.0
    %vm2307 = vcmp.gt.f32.partialorder %v2302, 0.0
    %v2308 = vmul.f32 %v2300, 0.2
    %v2309 = vmul.f32 %v2302, 0.2
    %v2310 = vsel %vm2306, %v2300, %v2308
    %v2311 = vsel %vm2307, %v2302, %v2309
    %v2312 = vpack.c.bf16 %v2310, %v2310
    %v2313 = vpack.c.bf16 %v2311, %v2311
    %v2314 = vld [vmem:[#allocation9] sm:$0xf]
    %v2315 = vld [vmem:[#allocation9 + $0x4] sm:$0xf]
    %v2316 = vld [vmem:[#allocation9 + $0x8] sm:$0xf]
    %v2317 = vld [vmem:[#allocation9 + $0xc] sm:$0xf]
    %v2318 = vld [vmem:[#allocation9 + $0x10] sm:$0xf]
    %v2319 = vld [vmem:[#allocation9 + $0x14] sm:$0xf]
    %v2320 = vld [vmem:[#allocation9 + $0x18] sm:$0xf]
    %v2321 = vld [vmem:[#allocation9 + $0x1c] sm:$0xf]
    %v2322 = vld [vmem:[#allocation9 + $0x20] sm:$0xf]
    %v2323 = vld [vmem:[#allocation9 + $0x24] sm:$0xf]
    %v2324 = vld [vmem:[#allocation9 + $0x28] sm:$0xf]
    %v2325 = vld [vmem:[#allocation9 + $0x2c] sm:$0xf]
    %v2326 = vld [vmem:[#allocation9 + $0x30] sm:$0xf]
    %v2327 = vld [vmem:[#allocation9 + $0x34] sm:$0xf]
    %v2328 = vld [vmem:[#allocation9 + $0x38] sm:$0xf]
    %v2329 = vld [vmem:[#allocation9 + $0x3c] sm:$0xf]
    %v2330 = vld [vmem:[#allocation9 + $0x40] sm:$0xf]
    %v2331 = vld [vmem:[#allocation9 + $0x44] sm:$0xf]
    %v2332 = vld [vmem:[#allocation9 + $0x48] sm:$0xf]
    %v2333 = vld [vmem:[#allocation9 + $0x4c] sm:$0xf]
    %v2334 = vld [vmem:[#allocation9 + $0x50] sm:$0xf]
    %v2335 = vld [vmem:[#allocation9 + $0x54] sm:$0xf]
    %v2336 = vld [vmem:[#allocation9 + $0x58] sm:$0xf]
    %v2337 = vld [vmem:[#allocation9 + $0x5c] sm:$0xf]
    %v2338 = vld [vmem:[#allocation9 + $0x60] sm:$0xf]
    %v2339 = vld [vmem:[#allocation9 + $0x64] sm:$0xf]
    %v2340 = vld [vmem:[#allocation9 + $0x68] sm:$0xf]
    %v2341 = vld [vmem:[#allocation9 + $0x6c] sm:$0xf]
    %v2342 = vld [vmem:[#allocation9 + $0x70] sm:$0xf]
    %v2343 = vld [vmem:[#allocation9 + $0x74] sm:$0xf]
    %v2344 = vld [vmem:[#allocation9 + $0x78] sm:$0xf]
    %v2345 = vld [vmem:[#allocation9 + $0x7c] sm:$0xf]
    %v2346 = vld [vmem:[%s6] sm:$0x1]
    %v2348 = vlaneseq
    %v2349 = vshrl.u32 %v2348, 7
    %v2350 = vsub.s32 0, %v2349
    %v2351 = vrot.slane %v2346, %v2350
    %v2385 = vunpack.c.l.b16 %v2314
    %v2386 = vunpack.c.l.b16 %v2315
    %v2387 = vunpack.c.l.b16 %v2316
    %v2388 = vunpack.c.l.b16 %v2317
    %v2389 = vunpack.c.l.b16 %v2318
    %v2390 = vunpack.c.l.b16 %v2319
    %v2391 = vunpack.c.l.b16 %v2320
    %v2392 = vunpack.c.l.b16 %v2321
    %v2393 = vunpack.c.l.b16 %v2322
    %v2394 = vunpack.c.l.b16 %v2323
    %v2395 = vunpack.c.l.b16 %v2324
    %v2396 = vunpack.c.l.b16 %v2325
    %v2397 = vunpack.c.l.b16 %v2326
    %v2398 = vunpack.c.l.b16 %v2327
    %v2399 = vunpack.c.l.b16 %v2328
    %v2400 = vunpack.c.l.b16 %v2329
    %v2401 = vunpack.c.l.b16 %v2330
    %v2402 = vunpack.c.l.b16 %v2331
    %v2403 = vunpack.c.l.b16 %v2332
    %v2404 = vunpack.c.l.b16 %v2333
    %v2405 = vunpack.c.l.b16 %v2334
    %v2406 = vunpack.c.l.b16 %v2335
    %v2407 = vunpack.c.l.b16 %v2336
    %v2408 = vunpack.c.l.b16 %v2337
    %v2409 = vunpack.c.l.b16 %v2338
    %v2410 = vunpack.c.l.b16 %v2339
    %v2411 = vunpack.c.l.b16 %v2340
    %v2412 = vunpack.c.l.b16 %v2341
    %v2413 = vunpack.c.l.b16 %v2342
    %v2414 = vunpack.c.l.b16 %v2343
    %v2415 = vunpack.c.l.b16 %v2344
    %v2416 = vunpack.c.l.b16 %v2345
    %v2417 = vpack.c.b16 %v2386, %v2385
    %v2418 = vpack.c.b16 %v2388, %v2387
    %v2419 = vpack.c.b16 %v2390, %v2389
    %v2420 = vpack.c.b16 %v2392, %v2391
    %v2421 = vpack.c.b16 %v2394, %v2393
    %v2422 = vpack.c.b16 %v2396, %v2395
    %v2423 = vpack.c.b16 %v2398, %v2397
    %v2424 = vpack.c.b16 %v2400, %v2399
    %v2425 = vpack.c.b16 %v2402, %v2401
    %v2426 = vpack.c.b16 %v2404, %v2403
    %v2427 = vpack.c.b16 %v2406, %v2405
    %v2428 = vpack.c.b16 %v2408, %v2407
    %v2429 = vpack.c.b16 %v2410, %v2409
    %v2430 = vpack.c.b16 %v2412, %v2411
    %v2431 = vpack.c.b16 %v2414, %v2413
    %v2432 = vpack.c.b16 %v2416, %v2415
    %2449 = vmatprep.subr.bf16.mxu0 0
    %2450 = vmatpush1.bf16.msra.mxu0 %v2424
    %2451 = vmatprep.subr.bf16.mxu0 0
    %2452 = vmatpush1.bf16.msra.mxu0 %v2423
    %2453 = vmatprep.subr.bf16.mxu0 0
    %2454 = vmatpush1.bf16.msra.mxu0 %v2422
    %2455 = vmatprep.subr.bf16.mxu0 0
    %2456 = vmatpush1.bf16.msra.mxu0 %v2421
    %2457 = vmatprep.subr.bf16.mxu0 0
    %2458 = vmatpush1.bf16.msra.mxu0 %v2420
    %2459 = vmatprep.subr.bf16.mxu0 0
    %2460 = vmatpush1.bf16.msra.mxu0 %v2419
    %2461 = vmatprep.subr.bf16.mxu0 0
    %2462 = vmatpush1.bf16.msra.mxu0 %v2418
    %2463 = vmatprep.subr.bf16.mxu0 0
    %2464 = vmatpush1.bf16.msra.mxu0 %v2417
    %2465 = vmatprep.subr.bf16.mxu0 0
    %2466 = vmatpush2.bf16.msra.mxu0 %v2432
    %2467 = vmatprep.subr.bf16.mxu0 0
    %2468 = vmatpush2.bf16.msra.mxu0 %v2431
    %2469 = vmatprep.subr.bf16.mxu0 0
    %2470 = vmatpush2.bf16.msra.mxu0 %v2430
    %2471 = vmatprep.subr.bf16.mxu0 0
    %2472 = vmatpush2.bf16.msra.mxu0 %v2429
    %2473 = vmatprep.subr.bf16.mxu0 0
    %2474 = vmatpush2.bf16.msra.mxu0 %v2428
    %2475 = vmatprep.subr.bf16.mxu0 0
    %2476 = vmatpush2.bf16.msra.mxu0 %v2427
    %2477 = vmatprep.subr.bf16.mxu0 0
    %2478 = vmatpush2.bf16.msra.mxu0 %v2426
    %2479 = vmatprep.subr.bf16.mxu0 0
    %2480 = vmatpush2.bf16.msra.mxu0 %v2425
    %2481 = vmatprep.mubr.bf16.mxu0 %v2313
    %2482 = vmatmul.mubr.bf16.gmra.mxu0 %v2312
    %v2483 = vpop.f32.mrf.mxu0
    %v2484 = vadd.f32 %v2351, %v2483
    %v2485 = vpop.f32.mrf.mxu0
    %v2486 = vpop.f32.mrf.mxu0
    %v2487 = vpop.f32.mrf.mxu0
    %2488 = vdwg.mxu0
    %vm2489 = vcmp.gt.f32.partialorder %v2484, 0.0
    %v2490 = vmul.f32 %v2484, 0.2
    %v2491 = vsel %vm2489, %v2484, %v2490
    %v2492 = vld [vmem:[%s7] sm:$0x1]
    %v2494 = vlaneseq
    %v2495 = vshrl.u32 %v2494, 7
    %v2496 = vsub.s32 0, %v2495
    %v2497 = vrot.slane %v2492, %v2496
    %v2499 = vmul.f32 %v2491, %v2497
    %2500 = vadd.xlane.f32.xlu0 %v2499
    %v2501 = vpop.xlane.xlu0 %2500
    %v2502 = vld [vmem:[#allocation2] sm:$0x1]
    %v2504 = vlaneseq
    %v2505 = vshrl.u32 %v2504, 7
    %v2506 = vsub.s32 0, %v2505
    %v2507 = vrot.slane %v2502, %v2506
    %v2509 = vadd.f32 %v2501, %v2507
    %v2510 = vxor.u32 %v2509, 2147483648
    %v2511 = vmul.f32 %v2510, 1.442695
    %v2512 = vpow.pop %v2511
    %v2513 = vadd.f32 %v2512, 1.0
    %v2514 = vrcp.pop %v2513
    %v2515 = vmul.f32 1.0, %v2514
    %2517 = vset.pattern.permute.xlu0 0
    %2518 = vperm.xlu0 %2517, %v2515
    %v2519 = vpop.permute.xlu0 %2518
    %2521 = vst [vmem:[#allocation11] sm:$0xff] %v2519
    // Predicated region
    $region54: #{tpu_custom_call.1} parent=1 // pred_check
      _
    $region55: #{tpu_custom_call.1} parent=1 // pred_check_branch
      %2523 = sbr.rel (0) target = $region57
    $region56: #{tpu_custom_call.1} parent=1 // pred_region
      %s2525 = ssub.s32 128, 128
      %2526 = vsyncadd [#allocation5], %s2525
      %s2528 = sshll.u32 [#allocation11], 4
      %s2529 = int_to_ptr.vmem [resolvable:$true] %s2528
      %2531 = dma.vmem_to_hbm [thread:$0]  %s2529, 128, %s9, [#allocation5]
    $region57: #{tpu_custom_call.1} parent=1 // pred_fallthru
      _
    // Predicated region
    $region58: #{tpu_custom_call.1} parent=1 // pred_check
      _
    $region59: #{tpu_custom_call.1} parent=1 // pred_check_branch
      %2533 = sbr.rel (0) target = $region61
    $region60: #{tpu_custom_call.1} parent=1 // pred_region
      %2534 = dma.done [#allocation5], 128
    $region61: #{tpu_custom_call.1} parent=1 // pred_fallthru
      _
    %2535 = vsyncpa [#allocation4], 1
    %2536 = vsyncpa [#allocation7], 1
    %2537 = vsyncpa [#allocation10], 1
    %2538 = vsyncpa [#allocation5], 1

</llo_original>
